<compile_context>
chip_gen: v6e
topology: v6e:2x2x1
jax: 0.10.0
libtpu: 0.0.40
codegen_flags: <defaults>
</compile_context>

<pallas_src>
import functools
import math

import jax
import jax.numpy as jnp
from jax import lax
from jax.experimental import pallas as pl
from jax.experimental.pallas import tpu as pltpu


# ----------------------------------------------------------------------------
# Fused encoder kernel: grid = (B // Bblk, n_layer); one batch block x one
# layer per grid step.  Activation (Bblk*T, D) lives in VMEM across layers.
# ----------------------------------------------------------------------------
def encoder_kernel(lens_ref,                       # SMEM (B,) scalar prefetch
                   x_ref,                          # (Bblk, T, D) tok+pos in
                   wqkv_ref, bqkv_ref, wo_ref, bo_ref,
                   g1_ref, be1_ref, w1_ref, b1_ref, w2_ref, b2_ref,
                   g2_ref, be2_ref,
                   o_ref,                          # (Bblk, T, D) out
                   h_ref, ctx_ref, bias_ref,       # VMEM scratch
                   *, n_heads):
    bb = pl.program_id(0)
    l = pl.program_id(1)
    n_layer = pl.num_programs(1)
    Bblk, T, D = x_ref.shape
    M = Bblk * T
    H = n_heads
    dh = D // H
    scale = 1.0 / math.sqrt(dh)
    eps = 1e-5

    # First layer of each batch block: load the activation slab into the
    # layer-resident scratch and build the key-padding bias once (hoisted
    # out of the per-layer loop).
    @pl.when(l == 0)
    def _():
        h_ref[...] = x_ref[...].reshape(M, D)
        col = lax.broadcasted_iota(jnp.int32, (1, T), 1)
        for i in range(Bblk):                                    # static, small
            seq_len = lens_ref[bb * Bblk + i]
            bias_ref[i:i + 1, :] = jnp.where(col < seq_len, 0.0,
                                             -1e9).astype(jnp.float32)

    x = h_ref[...]                                   # (M, D) f32 resident act
    x_bf = x.astype(jnp.bfloat16)

    # --- fused QKV projection: one (M, D) @ (D, 3D) MXU matmul --------------
    qkv = jnp.dot(x_bf, wqkv_ref[0],
                  preferred_element_type=jnp.float32) + bqkv_ref[0]   # (M, 3D)

    bias = bias_ref[...][:, None, :]                 # (Bblk, 1, T) f32

    # --- per-head attention core (batched over Bblk, 3D einsums) ------------
    for h in range(H):
        q_h = (qkv[:, h * dh:(h + 1) * dh] * scale).reshape(Bblk, T, dh)
        k_h = qkv[:, D + h * dh:D + (h + 1) * dh].reshape(Bblk, T, dh)
        v_h = qkv[:, 2 * D + h * dh:2 * D + (h + 1) * dh].reshape(Bblk, T, dh)

        s = jnp.einsum('bqd,bkd->bqk', q_h.astype(jnp.bfloat16),
                       k_h.astype(jnp.bfloat16),
                       preferred_element_type=jnp.float32)        # (Bblk,T,T)
        s = s + bias
        m = jnp.max(s, axis=-1, keepdims=True)
        p = jnp.exp(s - m)
        denom = jnp.sum(p, axis=-1, keepdims=True)
        p = p * pl.reciprocal(denom, approx=True)                 # EUP

        ctx_h = jnp.einsum('bqk,bkd->bqd', p.astype(jnp.bfloat16),
                           v_h.astype(jnp.bfloat16),
                           preferred_element_type=jnp.float32)    # (Bblk,T,dh)
        # Head merge: drop head h into its lane slot of the (M, D) ctx slab.
        ctx_ref[:, h * dh:(h + 1) * dh] = ctx_h.reshape(M, dh)

    # --- single (M, D) @ (D, D) output projection ---------------------------
    attn = jnp.dot(ctx_ref[...].astype(jnp.bfloat16), wo_ref[0],
                   preferred_element_type=jnp.float32) + bo_ref[0]    # (M, D)

    # --- residual + LayerNorm 1 (f32) ---------------------------------------
    y = x + attn
    mu = jnp.mean(y, axis=-1, keepdims=True)
    var = jnp.mean((y - mu) ** 2, axis=-1, keepdims=True)
    y = (y - mu) * lax.rsqrt(var + eps)
    y = y * g1_ref[0] + be1_ref[0]

    # --- position-wise FFN (bf16 MXU operands, f32 accumulate) --------------
    h1 = jnp.dot(y.astype(jnp.bfloat16), w1_ref[0],
                 preferred_element_type=jnp.float32) + b1_ref[0]
    h1 = jnp.maximum(h1, 0.0)
    h2 = jnp.dot(h1.astype(jnp.bfloat16), w2_ref[0],
                 preferred_element_type=jnp.float32) + b2_ref[0]

    # --- residual + LayerNorm 2 (f32) ---------------------------------------
    z = y + h2
    mu2 = jnp.mean(z, axis=-1, keepdims=True)
    var2 = jnp.mean((z - mu2) ** 2, axis=-1, keepdims=True)
    z = (z - mu2) * lax.rsqrt(var2 + eps)
    z = z * g2_ref[0] + be2_ref[0]

    h_ref[...] = z                                   # carry to next layer

    @pl.when(l == n_layer - 1)
    def _():
        o_ref[...] = z.reshape(Bblk, T, D)


def _pick_batch_block(batch):
    """Largest divisor of `batch` that still leaves >= 2 parallel grid steps
    (keeps both v7x TensorCores busy); falls back to 1."""
    for bb in range(batch // 2, 0, -1):
        if batch % bb == 0:
            return bb
    return 1


def _pick_vmem_limit():
    """Scoped VMEM budget from physical VMEM with headroom (v7x: ~56 MiB,
    v5e/v6e: 100 MiB); conservative fallback if the query is unavailable."""
    try:
        cap = int(pltpu.get_tpu_info().vmem_capacity_bytes)
        return min(cap - 8 * 1024 * 1024, 100 * 1024 * 1024)
    except Exception:
        return 64 * 1024 * 1024


def fused_encoder(x, lengths, p, n_heads, b_block=None):
    """x: (B,T,D) f32 tok+pos embeddings; lengths: (B,) int32; p: stacked params."""
    B, T, D = x.shape
    L = p["wqkv"].shape[0]
    F = p["w1"].shape[2]
    H = n_heads
    assert D % H == 0
    if b_block is None:
        b_block = _pick_batch_block(B)
    assert B % b_block == 0
    n_bblk = B // b_block
    M = b_block * T

    weight_names = ["wqkv", "bqkv", "wo", "bo", "ln1_g", "ln1_b",
                    "w1", "b1", "w2", "b2", "ln2_g", "ln2_b"]
    weights = [p[n] for n in weight_names]

    def layer_spec(arr):
        nd = arr.ndim
        blk = (1,) + arr.shape[1:]
        return pl.BlockSpec(blk, lambda bb, l, lens, _nd=nd: (l,) + (0,) * (_nd - 1))

    in_specs = [pl.BlockSpec((b_block, T, D), lambda bb, l, lens: (bb, 0, 0))]
    in_specs += [layer_spec(w) for w in weights]

    # Advisory cost estimate (weights fetched once per batch block, not per
    # batch element).
    flops_step = (2 * M * D * (3 * D)          # fused QKV
                  + 4 * M * T * D              # scores + ctx (all heads)
                  + 2 * M * D * D              # output projection
                  + 4 * M * D * F)             # FFN
    flops = n_bblk * L * flops_step
    transcendentals = n_bblk * L * (H * b_block * T * T + 2 * M)
    weight_bytes = sum(int(w.size) * w.dtype.itemsize for w in weights)
    bytes_accessed = (int(x.size) * 4 + B * T * D * 4 + int(lengths.size) * 4
                      + n_bblk * weight_bytes)

    kernel = functools.partial(encoder_kernel, n_heads=n_heads)
    return pl.pallas_call(
        kernel,
        out_shape=jax.ShapeDtypeStruct((B, T, D), jnp.float32),
        grid_spec=pltpu.PrefetchScalarGridSpec(
            num_scalar_prefetch=1,
            grid=(n_bblk, L),
            in_specs=in_specs,
            out_specs=pl.BlockSpec((b_block, T, D), lambda bb, l, lens: (bb, 0, 0)),
            scratch_shapes=[pltpu.VMEM((M, D), jnp.float32),      # resident act
                            pltpu.VMEM((M, D), jnp.float32),      # merged ctx
                            pltpu.VMEM((b_block, T), jnp.float32)],  # key bias
        ),
        compiler_params=pltpu.CompilerParams(
            dimension_semantics=("parallel", "arbitrary"),
            vmem_limit_bytes=int(_pick_vmem_limit()),
        ),
        cost_estimate=pl.CostEstimate(flops=int(flops),
                                      transcendentals=int(transcendentals),
                                      bytes_accessed=int(bytes_accessed)),
    )(lengths, x, *weights)


# ----------------------------------------------------------------------------
# Encoder forward: XLA glue = embedding gather + pos-enc add; everything else
# is the single fused Pallas kernel above.
# ----------------------------------------------------------------------------
def encoder_forward(emb_table, pos_enc, stacked, x_ids, lengths, n_heads):
    B, T = x_ids.shape
    x = jnp.take(emb_table, x_ids, axis=0) + pos_enc[None, :T, :]   # (B,T,D)
    return fused_encoder(x, lengths, stacked, n_heads)


# ----------------------------------------------------------------------------
# Parameter construction (deterministic, synthetic) + pure-JAX reference
# ----------------------------------------------------------------------------
def sinusoidal_pos_encoding(max_len, d_model):
    pos = jnp.arange(max_len, dtype=jnp.float32)[:, None]
    i = jnp.arange(0, d_model, 2, dtype=jnp.float32)
    div = jnp.power(10000.0, -(i / d_model))
    pe = jnp.zeros((max_len, d_model), dtype=jnp.float32)
    pe = pe.at[:, 0::2].set(jnp.sin(pos * div))
    pe = pe.at[:, 1::2].set(jnp.cos(pos * div))
    return pe


def init_encoder_params(key, vocab, max_len, d_model, d_ffn, n_heads, n_layer):
    D, F = d_model, d_ffn
    keys = jax.random.split(key, 1 + n_layer)
    emb = 0.02 * jax.random.normal(keys[0], (vocab, D), jnp.float32)
    pos = sinusoidal_pos_encoding(max_len, D)

    base = []
    for li in range(n_layer):
        k = jax.random.split(keys[1 + li], 6)
        base.append(dict(
            wq=0.02 * jax.random.normal(k[0], (D, D), jnp.float32), bq=jnp.zeros((D,), jnp.float32),
            wk=0.02 * jax.random.normal(k[1], (D, D), jnp.float32), bk=jnp.zeros((D,), jnp.float32),
            wv=0.02 * jax.random.normal(k[2], (D, D), jnp.float32), bv=jnp.zeros((D,), jnp.float32),
            wo=0.02 * jax.random.normal(k[3], (D, D), jnp.float32), bo=jnp.zeros((D,), jnp.float32),
            ln1_g=jnp.ones((D,), jnp.float32), ln1_b=jnp.zeros((D,), jnp.float32),
            w1=0.02 * jax.random.normal(k[4], (D, F), jnp.float32), b1=jnp.zeros((F,), jnp.float32),
            w2=0.02 * jax.random.normal(k[5], (F, D), jnp.float32), b2=jnp.zeros((D,), jnp.float32),
            ln2_g=jnp.ones((D,), jnp.float32), ln2_b=jnp.zeros((D,), jnp.float32)))

    def stack(name):
        return jnp.stack([lp[name] for lp in base], axis=0)

    bf16 = jnp.bfloat16
    stacked = {
        # fused QKV weight (L, D, 3D) and bias (L, 1, 3D): columns ordered
        # [q | k | v]; within each part, head h occupies cols h*dh:(h+1)*dh.
        "wqkv": jnp.concatenate([stack("wq"), stack("wk"), stack("wv")],
                                axis=2).astype(bf16),
        "bqkv": jnp.concatenate([stack("bq"), stack("bk"), stack("bv")],
                                axis=1)[:, None, :],
        "wo": stack("wo").astype(bf16), "bo": stack("bo")[:, None, :],
        "ln1_g": stack("ln1_g")[:, None, :], "ln1_b": stack("ln1_b")[:, None, :],
        "w1": stack("w1").astype(bf16), "b1": stack("b1")[:, None, :],
        "w2": stack("w2").astype(bf16), "b2": stack("b2")[:, None, :],
        "ln2_g": stack("ln2_g")[:, None, :], "ln2_b": stack("ln2_b")[:, None, :],
    }
    return emb, pos, base, stacked


def reference_forward(emb, pos, base, x_ids, lengths, n_heads):
    """Pure-JAX f32 reference of the PyTorch Encoder forward (eval mode)."""
    B, T = x_ids.shape
    D = emb.shape[1]
    dh = D // n_heads
    x = jnp.take(emb, x_ids, axis=0) + pos[None, :T, :]
    col = jnp.arange(T)
    bias = jnp.where(col[None, :] < lengths[:, None], 0.0, -1e9)      # (B,T)
    for lp in base:
        q = x @ lp["wq"] + lp["bq"]
        k = x @ lp["wk"] + lp["bk"]
        v = x @ lp["wv"] + lp["bv"]
        q = q.reshape(B, T, n_heads, dh).transpose(0, 2, 1, 3)
        k = k.reshape(B, T, n_heads, dh).transpose(0, 2, 1, 3)
        v = v.reshape(B, T, n_heads, dh).transpose(0, 2, 1, 3)
        s = jnp.einsum('bhtd,bhsd->bhts', q, k) / math.sqrt(dh)
        s = s + bias[:, None, None, :]
        p = jax.nn.softmax(s, axis=-1)
        ctx = jnp.einsum('bhts,bhsd->bhtd', p, v).transpose(0, 2, 1, 3).reshape(B, T, D)
        attn = ctx @ lp["wo"] + lp["bo"]
        y = x + attn
        mu = jnp.mean(y, -1, keepdims=True)
        var = jnp.mean((y - mu) ** 2, -1, keepdims=True)
        y = (y - mu) * lax.rsqrt(var + 1e-5) * lp["ln1_g"] + lp["ln1_b"]
        h1 = jnp.maximum(y @ lp["w1"] + lp["b1"], 0.0)
        h2 = h1 @ lp["w2"] + lp["b2"]
        z = y + h2
        mu2 = jnp.mean(z, -1, keepdims=True)
        var2 = jnp.mean((z - mu2) ** 2, -1, keepdims=True)
        x = (z - mu2) * lax.rsqrt(var2 + 1e-5) * lp["ln2_g"] + lp["ln2_b"]
    return x


if __name__ == "__main__":
    VOCAB, MAX_LEN = 50, 16
    D_MODEL, D_FFN, N_HEADS, N_LAYER = 32, 64, 4, 2
    B, T = 2, 8

    key = jax.random.PRNGKey(0)
    k_param, k_ids = jax.random.split(key)
    emb, pos, base, stacked = init_encoder_params(
        k_param, VOCAB, MAX_LEN, D_MODEL, D_FFN, N_HEADS, N_LAYER)

    x_ids = jax.random.randint(k_ids, (B, T), 0, VOCAB, dtype=jnp.int32)
    # key-padding mask expressed as per-sequence lengths (second seq length 6)
    lengths = jnp.array([T, 6], dtype=jnp.int32)

    out = encoder_forward(emb, pos, stacked, x_ids, lengths, N_HEADS)
    out = jax.block_until_ready(out)

    ref = reference_forward(emb, pos, base, x_ids, lengths, N_HEADS)
    assert out.shape == (B, T, D_MODEL)
    assert out.dtype == jnp.float32
    assert bool(jnp.all(jnp.isfinite(out)))
    assert float(jnp.max(jnp.abs(out - ref))) < 0.1   # bf16/approx-recip tolerance
    print("KERNEL_OK")
</pallas_src>

<mosaic_0001>
module attributes {stable_mosaic.version = 11 : i64} {
  func.func @encoder_kernel(%arg0: i32, %arg1: i32, %arg2: memref<2xi32, #tpu.memory_space<smem>>, %arg3: memref<1x8x32xf32, #tpu.memory_space<vmem>>, %arg4: memref<1x32x96xbf16, #tpu.memory_space<vmem>>, %arg5: memref<1x1x96xf32, #tpu.memory_space<vmem>>, %arg6: memref<1x32x32xbf16, #tpu.memory_space<vmem>>, %arg7: memref<1x1x32xf32, #tpu.memory_space<vmem>>, %arg8: memref<1x1x32xf32, #tpu.memory_space<vmem>>, %arg9: memref<1x1x32xf32, #tpu.memory_space<vmem>>, %arg10: memref<1x32x64xbf16, #tpu.memory_space<vmem>>, %arg11: memref<1x1x64xf32, #tpu.memory_space<vmem>>, %arg12: memref<1x64x32xbf16, #tpu.memory_space<vmem>>, %arg13: memref<1x1x32xf32, #tpu.memory_space<vmem>>, %arg14: memref<1x1x32xf32, #tpu.memory_space<vmem>>, %arg15: memref<1x1x32xf32, #tpu.memory_space<vmem>>, %arg16: memref<1x8x32xf32, #tpu.memory_space<vmem>>, %arg17: memref<8x32xf32, #tpu.memory_space<vmem>>, %arg18: memref<8x32xf32, #tpu.memory_space<vmem>>, %arg19: memref<1x8xf32, #tpu.memory_space<vmem>>) attributes {dimension_semantics = [#tpu.dimension_semantics<parallel>, #tpu.dimension_semantics<arbitrary>], iteration_bounds = array<i64: 2, 2>, scalar_prefetch = 1 : i64, scratch_operands = 3 : i64, tpu.core_type = #tpu.core_type<tc>, window_params = [{transform_indices = @transform_0, window_bounds = array<i64: 1, 8, 32>}, {transform_indices = @transform_1, window_bounds = array<i64: 1, 32, 96>}, {transform_indices = @transform_2, window_bounds = array<i64: 1, 1, 96>}, {transform_indices = @transform_3, window_bounds = array<i64: 1, 32, 32>}, {transform_indices = @transform_4, window_bounds = array<i64: 1, 1, 32>}, {transform_indices = @transform_5, window_bounds = array<i64: 1, 1, 32>}, {transform_indices = @transform_6, window_bounds = array<i64: 1, 1, 32>}, {transform_indices = @transform_7, window_bounds = array<i64: 1, 32, 64>}, {transform_indices = @transform_8, window_bounds = array<i64: 1, 1, 64>}, {transform_indices = @transform_9, window_bounds = array<i64: 1, 64, 32>}, {transform_indices = @transform_10, window_bounds = array<i64: 1, 1, 32>}, {transform_indices = @transform_11, window_bounds = array<i64: 1, 1, 32>}, {transform_indices = @transform_12, window_bounds = array<i64: 1, 1, 32>}, {transform_indices = @transform_13, window_bounds = array<i64: 1, 8, 32>}]} {
    %c0_i32 = arith.constant 0 : i32
    %0 = arith.cmpi eq, %arg1, %c0_i32 : i32
    %1 = arith.extui %0 : i1 to i32
    %c0_i32_0 = arith.constant 0 : i32
    %2 = arith.cmpi ne, %1, %c0_i32_0 : i32
    scf.if %2 {
      %c0_84 = arith.constant 0 : index
      %c0_85 = arith.constant 0 : index
      %c0_86 = arith.constant 0 : index
      %211 = vector.load %arg3[%c0_84, %c0_85, %c0_86] : memref<1x8x32xf32, #tpu.memory_space<vmem>>, vector<1x8x32xf32>
      %212 = vector.shape_cast %211 : vector<1x8x32xf32> to vector<8x32xf32>
      %c0_87 = arith.constant 0 : index
      %c0_88 = arith.constant 0 : index
      %213 = vector.load %arg17[%c0_87, %c0_88] : memref<8x32xf32, #tpu.memory_space<vmem>>, vector<8x32xf32>
      tpu.vector_store %arg17[%c0_87, %c0_88], %212 {strides = array<i32>} : memref<8x32xf32, #tpu.memory_space<vmem>>, vector<8x32xf32>,
      %214 = tpu.iota {dimensions = array<i32: 1>} : vector<1x8xi32>
      %c1_i32_89 = arith.constant 1 : i32
      %215 = arith.muli %arg0, %c1_i32_89 : i32
      %c0_i32_90 = arith.constant 0 : i32
      %216 = arith.addi %215, %c0_i32_90 : i32
      %217 = arith.index_cast %216 : i32 to index
      %218 = memref.load %arg2[%217] : memref<2xi32, #tpu.memory_space<smem>>
      %219 = vector.broadcast %218 : i32 to vector<1x8xi32>
      %220 = arith.cmpi slt, %214, %219 : vector<1x8xi32>
      %cst_91 = arith.constant 0.000000e+00 : f32
      %cst_92 = arith.constant -1.000000e+09 : f32
      %221 = vector.broadcast %cst_91 : f32 to vector<1x8xf32>
      %222 = vector.broadcast %cst_92 : f32 to vector<1x8xf32>
      %223 = arith.select %220, %221, %222 : vector<1x8xi1>, vector<1x8xf32>
      %c0_93 = arith.constant 0 : index
      %c0_94 = arith.constant 0 : index
      %224 = vector.load %arg19[%c0_93, %c0_94] : memref<1x8xf32, #tpu.memory_space<vmem>>, vector<1x8xf32>
      tpu.vector_store %arg19[%c0_93, %c0_94], %223 {strides = array<i32>} : memref<1x8xf32, #tpu.memory_space<vmem>>, vector<1x8xf32>,
    } else {
    }
    %c0 = arith.constant 0 : index
    %c0_1 = arith.constant 0 : index
    %3 = vector.load %arg17[%c0, %c0_1] : memref<8x32xf32, #tpu.memory_space<vmem>>, vector<8x32xf32>
    %4 = arith.truncf %3 : vector<8x32xf32> to vector<8x32xbf16>
    %c0_2 = arith.constant 0 : index
    %c0_3 = arith.constant 0 : index
    %c0_4 = arith.constant 0 : index
    %5 = vector.load %arg4[%c0_2, %c0_3, %c0_4] : memref<1x32x96xbf16, #tpu.memory_space<vmem>>, vector<1x32x96xbf16>
    %6 = vector.shape_cast %5 : vector<1x32x96xbf16> to vector<32x96xbf16>
    %cst = arith.constant dense<0.000000e+00> : vector<8x96xf32>
    %7 = tpu.matmul %4, %6, %cst {dimension_numbers = #tpu.dot_dimension_numbers<[1], [0], [0], [1], [0, 0, 1, 1], [], []>} : vector<8x32xbf16>, vector<32x96xbf16>, vector<8x96xf32> -> vector<8x96xf32>
    %c0_5 = arith.constant 0 : index
    %c0_6 = arith.constant 0 : index
    %c0_7 = arith.constant 0 : index
    %8 = vector.load %arg5[%c0_5, %c0_6, %c0_7] : memref<1x1x96xf32, #tpu.memory_space<vmem>>, vector<1x1x96xf32>
    %9 = vector.shape_cast %8 : vector<1x1x96xf32> to vector<1x96xf32>
    %10 = vector.broadcast %9 : vector<1x96xf32> to vector<8x96xf32>
    %11 = arith.addf %7, %10 : vector<8x96xf32>
    %c0_8 = arith.constant 0 : index
    %c0_9 = arith.constant 0 : index
    %12 = vector.load %arg19[%c0_8, %c0_9] : memref<1x8xf32, #tpu.memory_space<vmem>>, vector<1x8xf32>
    %13 = vector.shape_cast %12 : vector<1x8xf32> to vector<1x1x8xf32>
    %14 = vector.extract_strided_slice %11 {offsets = [0, 0], sizes = [8, 8], strides = [1, 1]} : vector<8x96xf32> to vector<8x8xf32>
    %cst_10 = arith.constant 0.353553385 : f32
    %15 = vector.broadcast %cst_10 : f32 to vector<8x8xf32>
    %16 = arith.mulf %14, %15 : vector<8x8xf32>
    %17 = vector.shape_cast %16 : vector<8x8xf32> to vector<1x8x8xf32>
    %18 = vector.extract_strided_slice %11 {offsets = [0, 32], sizes = [8, 8], strides = [1, 1]} : vector<8x96xf32> to vector<8x8xf32>
    %19 = vector.shape_cast %18 : vector<8x8xf32> to vector<1x8x8xf32>
    %20 = vector.extract_strided_slice %11 {offsets = [0, 64], sizes = [8, 8], strides = [1, 1]} : vector<8x96xf32> to vector<8x8xf32>
    %21 = vector.shape_cast %20 : vector<8x8xf32> to vector<1x8x8xf32>
    %22 = arith.truncf %17 : vector<1x8x8xf32> to vector<1x8x8xbf16>
    %23 = arith.truncf %19 : vector<1x8x8xf32> to vector<1x8x8xbf16>
    "tpu.trace_start"() <{level = 10 : i32, message = "bqd,bkd->bqk"}> : () -> ()
    %cst_11 = arith.constant dense<0.000000e+00> : vector<1x8x8xf32>
    %24 = tpu.matmul %22, %23, %cst_11 {dimension_numbers = #tpu.dot_dimension_numbers<[2], [2], [1], [1], [0, 0, 0, 1, 1, 1], [0], [0]>} : vector<1x8x8xbf16>, vector<1x8x8xbf16>, vector<1x8x8xf32> -> vector<1x8x8xf32>
    "tpu.trace_stop"() : () -> ()
    %25 = vector.broadcast %13 : vector<1x1x8xf32> to vector<1x8x8xf32>
    %26 = arith.addf %24, %25 : vector<1x8x8xf32>
    %cst_12 = arith.constant dense<0xFF800000> : vector<1x8xf32>
    %27 = vector.multi_reduction <maximumf>, %26, %cst_12 [2] : vector<1x8x8xf32> to vector<1x8xf32>
    %28 = vector.shape_cast %27 : vector<1x8xf32> to vector<1x8x1xf32>
    %29 = vector.broadcast %28 : vector<1x8x1xf32> to vector<1x8x8xf32>
    %30 = arith.subf %26, %29 : vector<1x8x8xf32>
    %31 = math.exp %30 : vector<1x8x8xf32>
    %cst_13 = arith.constant dense<0.000000e+00> : vector<1x8xf32>
    %32 = vector.multi_reduction <add>, %31, %cst_13 [2] : vector<1x8x8xf32> to vector<1x8xf32>
    %33 = vector.shape_cast %32 : vector<1x8xf32> to vector<1x8x1xf32>
    %34 = tpu.reciprocal %33 {approx = true} : vector<1x8x1xf32> -> vector<1x8x1xf32>
    %35 = vector.broadcast %34 : vector<1x8x1xf32> to vector<1x8x8xf32>
    %36 = arith.mulf %31, %35 : vector<1x8x8xf32>
    %37 = arith.truncf %36 : vector<1x8x8xf32> to vector<1x8x8xbf16>
    %38 = arith.truncf %21 : vector<1x8x8xf32> to vector<1x8x8xbf16>
    "tpu.trace_start"() <{level = 10 : i32, message = "bqk,bkd->bqd"}> : () -> ()
    %cst_14 = arith.constant dense<0.000000e+00> : vector<1x8x8xf32>
    %39 = tpu.matmul %37, %38, %cst_14 {dimension_numbers = #tpu.dot_dimension_numbers<[2], [1], [1], [2], [0, 0, 0, 1, 1, 2], [0], [0]>} : vector<1x8x8xbf16>, vector<1x8x8xbf16>, vector<1x8x8xf32> -> vector<1x8x8xf32>
    "tpu.trace_stop"() : () -> ()
    %40 = vector.shape_cast %39 : vector<1x8x8xf32> to vector<8x8xf32>
    %c0_15 = arith.constant 0 : index
    %c0_16 = arith.constant 0 : index
    %41 = vector.load %arg18[%c0_15, %c0_16] : memref<8x32xf32, #tpu.memory_space<vmem>>, vector<8x8xf32>
    tpu.vector_store %arg18[%c0_15, %c0_16], %40 {strides = array<i32>} : memref<8x32xf32, #tpu.memory_space<vmem>>, vector<8x8xf32>,
    %42 = vector.extract_strided_slice %11 {offsets = [0, 8], sizes = [8, 8], strides = [1, 1]} : vector<8x96xf32> to vector<8x8xf32>
    %cst_17 = arith.constant 0.353553385 : f32
    %43 = vector.broadcast %cst_17 : f32 to vector<8x8xf32>
    %44 = arith.mulf %42, %43 : vector<8x8xf32>
    %45 = vector.shape_cast %44 : vector<8x8xf32> to vector<1x8x8xf32>
    %46 = vector.extract_strided_slice %11 {offsets = [0, 40], sizes = [8, 8], strides = [1, 1]} : vector<8x96xf32> to vector<8x8xf32>
    %47 = vector.shape_cast %46 : vector<8x8xf32> to vector<1x8x8xf32>
    %48 = vector.extract_strided_slice %11 {offsets = [0, 72], sizes = [8, 8], strides = [1, 1]} : vector<8x96xf32> to vector<8x8xf32>
    %49 = vector.shape_cast %48 : vector<8x8xf32> to vector<1x8x8xf32>
    %50 = arith.truncf %45 : vector<1x8x8xf32> to vector<1x8x8xbf16>
    %51 = arith.truncf %47 : vector<1x8x8xf32> to vector<1x8x8xbf16>
    "tpu.trace_start"() <{level = 10 : i32, message = "bqd,bkd->bqk"}> : () -> ()
    %cst_18 = arith.constant dense<0.000000e+00> : vector<1x8x8xf32>
    %52 = tpu.matmul %50, %51, %cst_18 {dimension_numbers = #tpu.dot_dimension_numbers<[2], [2], [1], [1], [0, 0, 0, 1, 1, 1], [0], [0]>} : vector<1x8x8xbf16>, vector<1x8x8xbf16>, vector<1x8x8xf32> -> vector<1x8x8xf32>
    "tpu.trace_stop"() : () -> ()
    %53 = vector.broadcast %13 : vector<1x1x8xf32> to vector<1x8x8xf32>
    %54 = arith.addf %52, %53 : vector<1x8x8xf32>
    %cst_19 = arith.constant dense<0xFF800000> : vector<1x8xf32>
    %55 = vector.multi_reduction <maximumf>, %54, %cst_19 [2] : vector<1x8x8xf32> to vector<1x8xf32>
    %56 = vector.shape_cast %55 : vector<1x8xf32> to vector<1x8x1xf32>
    %57 = vector.broadcast %56 : vector<1x8x1xf32> to vector<1x8x8xf32>
    %58 = arith.subf %54, %57 : vector<1x8x8xf32>
    %59 = math.exp %58 : vector<1x8x8xf32>
    %cst_20 = arith.constant dense<0.000000e+00> : vector<1x8xf32>
    %60 = vector.multi_reduction <add>, %59, %cst_20 [2] : vector<1x8x8xf32> to vector<1x8xf32>
    %61 = vector.shape_cast %60 : vector<1x8xf32> to vector<1x8x1xf32>
    %62 = tpu.reciprocal %61 {approx = true} : vector<1x8x1xf32> -> vector<1x8x1xf32>
    %63 = vector.broadcast %62 : vector<1x8x1xf32> to vector<1x8x8xf32>
    %64 = arith.mulf %59, %63 : vector<1x8x8xf32>
    %65 = arith.truncf %64 : vector<1x8x8xf32> to vector<1x8x8xbf16>
    %66 = arith.truncf %49 : vector<1x8x8xf32> to vector<1x8x8xbf16>
    "tpu.trace_start"() <{level = 10 : i32, message = "bqk,bkd->bqd"}> : () -> ()
    %cst_21 = arith.constant dense<0.000000e+00> : vector<1x8x8xf32>
    %67 = tpu.matmul %65, %66, %cst_21 {dimension_numbers = #tpu.dot_dimension_numbers<[2], [1], [1], [2], [0, 0, 0, 1, 1, 2], [0], [0]>} : vector<1x8x8xbf16>, vector<1x8x8xbf16>, vector<1x8x8xf32> -> vector<1x8x8xf32>
    "tpu.trace_stop"() : () -> ()
    %68 = vector.shape_cast %67 : vector<1x8x8xf32> to vector<8x8xf32>
    %c0_22 = arith.constant 0 : index
    %c8 = arith.constant 8 : index
    %69 = vector.load %arg18[%c0_22, %c8] : memref<8x32xf32, #tpu.memory_space<vmem>>, vector<8x8xf32>
    tpu.vector_store %arg18[%c0_22, %c8], %68 {strides = array<i32>} : memref<8x32xf32, #tpu.memory_space<vmem>>, vector<8x8xf32>,
    %70 = vector.extract_strided_slice %11 {offsets = [0, 16], sizes = [8, 8], strides = [1, 1]} : vector<8x96xf32> to vector<8x8xf32>
    %cst_23 = arith.constant 0.353553385 : f32
    %71 = vector.broadcast %cst_23 : f32 to vector<8x8xf32>
    %72 = arith.mulf %70, %71 : vector<8x8xf32>
    %73 = vector.shape_cast %72 : vector<8x8xf32> to vector<1x8x8xf32>
    %74 = vector.extract_strided_slice %11 {offsets = [0, 48], sizes = [8, 8], strides = [1, 1]} : vector<8x96xf32> to vector<8x8xf32>
    %75 = vector.shape_cast %74 : vector<8x8xf32> to vector<1x8x8xf32>
    %76 = vector.extract_strided_slice %11 {offsets = [0, 80], sizes = [8, 8], strides = [1, 1]} : vector<8x96xf32> to vector<8x8xf32>
    %77 = vector.shape_cast %76 : vector<8x8xf32> to vector<1x8x8xf32>
    %78 = arith.truncf %73 : vector<1x8x8xf32> to vector<1x8x8xbf16>
    %79 = arith.truncf %75 : vector<1x8x8xf32> to vector<1x8x8xbf16>
    "tpu.trace_start"() <{level = 10 : i32, message = "bqd,bkd->bqk"}> : () -> ()
    %cst_24 = arith.constant dense<0.000000e+00> : vector<1x8x8xf32>
    %80 = tpu.matmul %78, %79, %cst_24 {dimension_numbers = #tpu.dot_dimension_numbers<[2], [2], [1], [1], [0, 0, 0, 1, 1, 1], [0], [0]>} : vector<1x8x8xbf16>, vector<1x8x8xbf16>, vector<1x8x8xf32> -> vector<1x8x8xf32>
    "tpu.trace_stop"() : () -> ()
    %81 = vector.broadcast %13 : vector<1x1x8xf32> to vector<1x8x8xf32>
    %82 = arith.addf %80, %81 : vector<1x8x8xf32>
    %cst_25 = arith.constant dense<0xFF800000> : vector<1x8xf32>
    %83 = vector.multi_reduction <maximumf>, %82, %cst_25 [2] : vector<1x8x8xf32> to vector<1x8xf32>
    %84 = vector.shape_cast %83 : vector<1x8xf32> to vector<1x8x1xf32>
    %85 = vector.broadcast %84 : vector<1x8x1xf32> to vector<1x8x8xf32>
    %86 = arith.subf %82, %85 : vector<1x8x8xf32>
    %87 = math.exp %86 : vector<1x8x8xf32>
    %cst_26 = arith.constant dense<0.000000e+00> : vector<1x8xf32>
    %88 = vector.multi_reduction <add>, %87, %cst_26 [2] : vector<1x8x8xf32> to vector<1x8xf32>
    %89 = vector.shape_cast %88 : vector<1x8xf32> to vector<1x8x1xf32>
    %90 = tpu.reciprocal %89 {approx = true} : vector<1x8x1xf32> -> vector<1x8x1xf32>
    %91 = vector.broadcast %90 : vector<1x8x1xf32> to vector<1x8x8xf32>
    %92 = arith.mulf %87, %91 : vector<1x8x8xf32>
    %93 = arith.truncf %92 : vector<1x8x8xf32> to vector<1x8x8xbf16>
    %94 = arith.truncf %77 : vector<1x8x8xf32> to vector<1x8x8xbf16>
    "tpu.trace_start"() <{level = 10 : i32, message = "bqk,bkd->bqd"}> : () -> ()
    %cst_27 = arith.constant dense<0.000000e+00> : vector<1x8x8xf32>
    %95 = tpu.matmul %93, %94, %cst_27 {dimension_numbers = #tpu.dot_dimension_numbers<[2], [1], [1], [2], [0, 0, 0, 1, 1, 2], [0], [0]>} : vector<1x8x8xbf16>, vector<1x8x8xbf16>, vector<1x8x8xf32> -> vector<1x8x8xf32>
    "tpu.trace_stop"() : () -> ()
    %96 = vector.shape_cast %95 : vector<1x8x8xf32> to vector<8x8xf32>
    %c0_28 = arith.constant 0 : index
    %c16 = arith.constant 16 : index
    %97 = vector.load %arg18[%c0_28, %c16] : memref<8x32xf32, #tpu.memory_space<vmem>>, vector<8x8xf32>
    tpu.vector_store %arg18[%c0_28, %c16], %96 {strides = array<i32>} : memref<8x32xf32, #tpu.memory_space<vmem>>, vector<8x8xf32>,
    %98 = vector.extract_strided_slice %11 {offsets = [0, 24], sizes = [8, 8], strides = [1, 1]} : vector<8x96xf32> to vector<8x8xf32>
    %cst_29 = arith.constant 0.353553385 : f32
    %99 = vector.broadcast %cst_29 : f32 to vector<8x8xf32>
    %100 = arith.mulf %98, %99 : vector<8x8xf32>
    %101 = vector.shape_cast %100 : vector<8x8xf32> to vector<1x8x8xf32>
    %102 = vector.extract_strided_slice %11 {offsets = [0, 56], sizes = [8, 8], strides = [1, 1]} : vector<8x96xf32> to vector<8x8xf32>
    %103 = vector.shape_cast %102 : vector<8x8xf32> to vector<1x8x8xf32>
    %104 = vector.extract_strided_slice %11 {offsets = [0, 88], sizes = [8, 8], strides = [1, 1]} : vector<8x96xf32> to vector<8x8xf32>
    %105 = vector.shape_cast %104 : vector<8x8xf32> to vector<1x8x8xf32>
    %106 = arith.truncf %101 : vector<1x8x8xf32> to vector<1x8x8xbf16>
    %107 = arith.truncf %103 : vector<1x8x8xf32> to vector<1x8x8xbf16>
    "tpu.trace_start"() <{level = 10 : i32, message = "bqd,bkd->bqk"}> : () -> ()
    %cst_30 = arith.constant dense<0.000000e+00> : vector<1x8x8xf32>
    %108 = tpu.matmul %106, %107, %cst_30 {dimension_numbers = #tpu.dot_dimension_numbers<[2], [2], [1], [1], [0, 0, 0, 1, 1, 1], [0], [0]>} : vector<1x8x8xbf16>, vector<1x8x8xbf16>, vector<1x8x8xf32> -> vector<1x8x8xf32>
    "tpu.trace_stop"() : () -> ()
    %109 = vector.broadcast %13 : vector<1x1x8xf32> to vector<1x8x8xf32>
    %110 = arith.addf %108, %109 : vector<1x8x8xf32>
    %cst_31 = arith.constant dense<0xFF800000> : vector<1x8xf32>
    %111 = vector.multi_reduction <maximumf>, %110, %cst_31 [2] : vector<1x8x8xf32> to vector<1x8xf32>
    %112 = vector.shape_cast %111 : vector<1x8xf32> to vector<1x8x1xf32>
    %113 = vector.broadcast %112 : vector<1x8x1xf32> to vector<1x8x8xf32>
    %114 = arith.subf %110, %113 : vector<1x8x8xf32>
    %115 = math.exp %114 : vector<1x8x8xf32>
    %cst_32 = arith.constant dense<0.000000e+00> : vector<1x8xf32>
    %116 = vector.multi_reduction <add>, %115, %cst_32 [2] : vector<1x8x8xf32> to vector<1x8xf32>
    %117 = vector.shape_cast %116 : vector<1x8xf32> to vector<1x8x1xf32>
    %118 = tpu.reciprocal %117 {approx = true} : vector<1x8x1xf32> -> vector<1x8x1xf32>
    %119 = vector.broadcast %118 : vector<1x8x1xf32> to vector<1x8x8xf32>
    %120 = arith.mulf %115, %119 : vector<1x8x8xf32>
    %121 = arith.truncf %120 : vector<1x8x8xf32> to vector<1x8x8xbf16>
    %122 = arith.truncf %105 : vector<1x8x8xf32> to vector<1x8x8xbf16>
    "tpu.trace_start"() <{level = 10 : i32, message = "bqk,bkd->bqd"}> : () -> ()
    %cst_33 = arith.constant dense<0.000000e+00> : vector<1x8x8xf32>
    %123 = tpu.matmul %121, %122, %cst_33 {dimension_numbers = #tpu.dot_dimension_numbers<[2], [1], [1], [2], [0, 0, 0, 1, 1, 2], [0], [0]>} : vector<1x8x8xbf16>, vector<1x8x8xbf16>, vector<1x8x8xf32> -> vector<1x8x8xf32>
    "tpu.trace_stop"() : () -> ()
    %124 = vector.shape_cast %123 : vector<1x8x8xf32> to vector<8x8xf32>
    %c0_34 = arith.constant 0 : index
    %c24 = arith.constant 24 : index
    %125 = vector.load %arg18[%c0_34, %c24] : memref<8x32xf32, #tpu.memory_space<vmem>>, vector<8x8xf32>
    tpu.vector_store %arg18[%c0_34, %c24], %124 {strides = array<i32>} : memref<8x32xf32, #tpu.memory_space<vmem>>, vector<8x8xf32>,
    %c0_35 = arith.constant 0 : index
    %c0_36 = arith.constant 0 : index
    %126 = vector.load %arg18[%c0_35, %c0_36] : memref<8x32xf32, #tpu.memory_space<vmem>>, vector<8x32xf32>
    %127 = arith.truncf %126 : vector<8x32xf32> to vector<8x32xbf16>
    %c0_37 = arith.constant 0 : index
    %c0_38 = arith.constant 0 : index
    %c0_39 = arith.constant 0 : index
    %128 = vector.load %arg6[%c0_37, %c0_38, %c0_39] : memref<1x32x32xbf16, #tpu.memory_space<vmem>>, vector<1x32x32xbf16>
    %129 = vector.shape_cast %128 : vector<1x32x32xbf16> to vector<32x32xbf16>
    %cst_40 = arith.constant dense<0.000000e+00> : vector<8x32xf32>
    %130 = tpu.matmul %127, %129, %cst_40 {dimension_numbers = #tpu.dot_dimension_numbers<[1], [0], [0], [1], [0, 0, 1, 1], [], []>} : vector<8x32xbf16>, vector<32x32xbf16>, vector<8x32xf32> -> vector<8x32xf32>
    %c0_41 = arith.constant 0 : index
    %c0_42 = arith.constant 0 : index
    %c0_43 = arith.constant 0 : index
    %131 = vector.load %arg7[%c0_41, %c0_42, %c0_43] : memref<1x1x32xf32, #tpu.memory_space<vmem>>, vector<1x1x32xf32>
    %132 = vector.shape_cast %131 : vector<1x1x32xf32> to vector<1x32xf32>
    %133 = vector.broadcast %132 : vector<1x32xf32> to vector<8x32xf32>
    %134 = arith.addf %130, %133 : vector<8x32xf32>
    %135 = arith.addf %3, %134 : vector<8x32xf32>
    %cst_44 = arith.constant dense<0.000000e+00> : vector<8xf32>
    %136 = vector.multi_reduction <add>, %135, %cst_44 [1] : vector<8x32xf32> to vector<8xf32>
    %137 = vector.shape_cast %136 : vector<8xf32> to vector<8x1xf32>
    %cst_45 = arith.constant 3.200000e+01 : f32
    %138 = vector.broadcast %cst_45 : f32 to vector<8x1xf32>
    %139 = arith.divf %137, %138 : vector<8x1xf32>
    %140 = vector.broadcast %139 : vector<8x1xf32> to vector<8x32xf32>
    %141 = arith.subf %135, %140 : vector<8x32xf32>
    %142 = arith.mulf %141, %141 : vector<8x32xf32>
    %cst_46 = arith.constant dense<0.000000e+00> : vector<8xf32>
    %143 = vector.multi_reduction <add>, %142, %cst_46 [1] : vector<8x32xf32> to vector<8xf32>
    %144 = vector.shape_cast %143 : vector<8xf32> to vector<8x1xf32>
    %cst_47 = arith.constant 3.200000e+01 : f32
    %145 = vector.broadcast %cst_47 : f32 to vector<8x1xf32>
    %146 = arith.divf %144, %145 : vector<8x1xf32>
    %147 = vector.broadcast %139 : vector<8x1xf32> to vector<8x32xf32>
    %148 = arith.subf %135, %147 : vector<8x32xf32>
    %cst_48 = arith.constant 9.99999974E-6 : f32
    %149 = vector.broadcast %cst_48 : f32 to vector<8x1xf32>
    %150 = arith.addf %146, %149 : vector<8x1xf32>
    %151 = math.rsqrt %150 : vector<8x1xf32>
    %152 = vector.broadcast %151 : vector<8x1xf32> to vector<8x32xf32>
    %153 = arith.mulf %148, %152 : vector<8x32xf32>
    %c0_49 = arith.constant 0 : index
    %c0_50 = arith.constant 0 : index
    %c0_51 = arith.constant 0 : index
    %154 = vector.load %arg8[%c0_49, %c0_50, %c0_51] : memref<1x1x32xf32, #tpu.memory_space<vmem>>, vector<1x1x32xf32>
    %155 = vector.shape_cast %154 : vector<1x1x32xf32> to vector<1x32xf32>
    %156 = vector.broadcast %155 : vector<1x32xf32> to vector<8x32xf32>
    %157 = arith.mulf %153, %156 : vector<8x32xf32>
    %c0_52 = arith.constant 0 : index
    %c0_53 = arith.constant 0 : index
    %c0_54 = arith.constant 0 : index
    %158 = vector.load %arg9[%c0_52, %c0_53, %c0_54] : memref<1x1x32xf32, #tpu.memory_space<vmem>>, vector<1x1x32xf32>
    %159 = vector.shape_cast %158 : vector<1x1x32xf32> to vector<1x32xf32>
    %160 = vector.broadcast %159 : vector<1x32xf32> to vector<8x32xf32>
    %161 = arith.addf %157, %160 : vector<8x32xf32>
    %162 = arith.truncf %161 : vector<8x32xf32> to vector<8x32xbf16>
    %c0_55 = arith.constant 0 : index
    %c0_56 = arith.constant 0 : index
    %c0_57 = arith.constant 0 : index
    %163 = vector.load %arg10[%c0_55, %c0_56, %c0_57] : memref<1x32x64xbf16, #tpu.memory_space<vmem>>, vector<1x32x64xbf16>
    %164 = vector.shape_cast %163 : vector<1x32x64xbf16> to vector<32x64xbf16>
    %cst_58 = arith.constant dense<0.000000e+00> : vector<8x64xf32>
    %165 = tpu.matmul %162, %164, %cst_58 {dimension_numbers = #tpu.dot_dimension_numbers<[1], [0], [0], [1], [0, 0, 1, 1], [], []>} : vector<8x32xbf16>, vector<32x64xbf16>, vector<8x64xf32> -> vector<8x64xf32>
    %c0_59 = arith.constant 0 : index
    %c0_60 = arith.constant 0 : index
    %c0_61 = arith.constant 0 : index
    %166 = vector.load %arg11[%c0_59, %c0_60, %c0_61] : memref<1x1x64xf32, #tpu.memory_space<vmem>>, vector<1x1x64xf32>
    %167 = vector.shape_cast %166 : vector<1x1x64xf32> to vector<1x64xf32>
    %168 = vector.broadcast %167 : vector<1x64xf32> to vector<8x64xf32>
    %169 = arith.addf %165, %168 : vector<8x64xf32>
    %cst_62 = arith.constant 0.000000e+00 : f32
    %170 = vector.broadcast %cst_62 : f32 to vector<8x64xf32>
    %171 = arith.maximumf %169, %170 : vector<8x64xf32>
    %172 = arith.truncf %171 : vector<8x64xf32> to vector<8x64xbf16>
    %c0_63 = arith.constant 0 : index
    %c0_64 = arith.constant 0 : index
    %c0_65 = arith.constant 0 : index
    %173 = vector.load %arg12[%c0_63, %c0_64, %c0_65] : memref<1x64x32xbf16, #tpu.memory_space<vmem>>, vector<1x64x32xbf16>
    %174 = vector.shape_cast %173 : vector<1x64x32xbf16> to vector<64x32xbf16>
    %cst_66 = arith.constant dense<0.000000e+00> : vector<8x32xf32>
    %175 = tpu.matmul %172, %174, %cst_66 {dimension_numbers = #tpu.dot_dimension_numbers<[1], [0], [0], [1], [0, 0, 1, 1], [], []>} : vector<8x64xbf16>, vector<64x32xbf16>, vector<8x32xf32> -> vector<8x32xf32>
    %c0_67 = arith.constant 0 : index
    %c0_68 = arith.constant 0 : index
    %c0_69 = arith.constant 0 : index
    %176 = vector.load %arg13[%c0_67, %c0_68, %c0_69] : memref<1x1x32xf32, #tpu.memory_space<vmem>>, vector<1x1x32xf32>
    %177 = vector.shape_cast %176 : vector<1x1x32xf32> to vector<1x32xf32>
    %178 = vector.broadcast %177 : vector<1x32xf32> to vector<8x32xf32>
    %179 = arith.addf %175, %178 : vector<8x32xf32>
    %180 = arith.addf %161, %179 : vector<8x32xf32>
    %cst_70 = arith.constant dense<0.000000e+00> : vector<8xf32>
    %181 = vector.multi_reduction <add>, %180, %cst_70 [1] : vector<8x32xf32> to vector<8xf32>
    %182 = vector.shape_cast %181 : vector<8xf32> to vector<8x1xf32>
    %cst_71 = arith.constant 3.200000e+01 : f32
    %183 = vector.broadcast %cst_71 : f32 to vector<8x1xf32>
    %184 = arith.divf %182, %183 : vector<8x1xf32>
    %185 = vector.broadcast %184 : vector<8x1xf32> to vector<8x32xf32>
    %186 = arith.subf %180, %185 : vector<8x32xf32>
    %187 = arith.mulf %186, %186 : vector<8x32xf32>
    %cst_72 = arith.constant dense<0.000000e+00> : vector<8xf32>
    %188 = vector.multi_reduction <add>, %187, %cst_72 [1] : vector<8x32xf32> to vector<8xf32>
    %189 = vector.shape_cast %188 : vector<8xf32> to vector<8x1xf32>
    %cst_73 = arith.constant 3.200000e+01 : f32
    %190 = vector.broadcast %cst_73 : f32 to vector<8x1xf32>
    %191 = arith.divf %189, %190 : vector<8x1xf32>
    %192 = vector.broadcast %184 : vector<8x1xf32> to vector<8x32xf32>
    %193 = arith.subf %180, %192 : vector<8x32xf32>
    %cst_74 = arith.constant 9.99999974E-6 : f32
    %194 = vector.broadcast %cst_74 : f32 to vector<8x1xf32>
    %195 = arith.addf %191, %194 : vector<8x1xf32>
    %196 = math.rsqrt %195 : vector<8x1xf32>
    %197 = vector.broadcast %196 : vector<8x1xf32> to vector<8x32xf32>
    %198 = arith.mulf %193, %197 : vector<8x32xf32>
    %c0_75 = arith.constant 0 : index
    %c0_76 = arith.constant 0 : index
    %c0_77 = arith.constant 0 : index
    %199 = vector.load %arg14[%c0_75, %c0_76, %c0_77] : memref<1x1x32xf32, #tpu.memory_space<vmem>>, vector<1x1x32xf32>
    %200 = vector.shape_cast %199 : vector<1x1x32xf32> to vector<1x32xf32>
    %201 = vector.broadcast %200 : vector<1x32xf32> to vector<8x32xf32>
    %202 = arith.mulf %198, %201 : vector<8x32xf32>
    %c0_78 = arith.constant 0 : index
    %c0_79 = arith.constant 0 : index
    %c0_80 = arith.constant 0 : index
    %203 = vector.load %arg15[%c0_78, %c0_79, %c0_80] : memref<1x1x32xf32, #tpu.memory_space<vmem>>, vector<1x1x32xf32>
    %204 = vector.shape_cast %203 : vector<1x1x32xf32> to vector<1x32xf32>
    %205 = vector.broadcast %204 : vector<1x32xf32> to vector<8x32xf32>
    %206 = arith.addf %202, %205 : vector<8x32xf32>
    %c0_81 = arith.constant 0 : index
    %c0_82 = arith.constant 0 : index
    %207 = vector.load %arg17[%c0_81, %c0_82] : memref<8x32xf32, #tpu.memory_space<vmem>>, vector<8x32xf32>
    tpu.vector_store %arg17[%c0_81, %c0_82], %206 {strides = array<i32>} : memref<8x32xf32, #tpu.memory_space<vmem>>, vector<8x32xf32>,
    %c1_i32 = arith.constant 1 : i32
    %208 = arith.cmpi eq, %arg1, %c1_i32 : i32
    %209 = arith.extui %208 : i1 to i32
    %c0_i32_83 = arith.constant 0 : i32
    %210 = arith.cmpi ne, %209, %c0_i32_83 : i32
    scf.if %210 {
      %211 = vector.shape_cast %206 : vector<8x32xf32> to vector<1x8x32xf32>
      %c0_84 = arith.constant 0 : index
      %c0_85 = arith.constant 0 : index
      %c0_86 = arith.constant 0 : index
      %212 = vector.load %arg16[%c0_84, %c0_85, %c0_86] : memref<1x8x32xf32, #tpu.memory_space<vmem>>, vector<1x8x32xf32>
      tpu.vector_store %arg16[%c0_84, %c0_85, %c0_86], %211 {strides = array<i32>} : memref<1x8x32xf32, #tpu.memory_space<vmem>>, vector<1x8x32xf32>,
    } else {
    }
    return
  }
  func.func @transform_0(%arg0: i32, %arg1: i32, %arg2: memref<2xi32, #tpu.memory_space<smem>>) -> (i32, i32, i32) {
    %c0_i32 = arith.constant 0 : i32
    %c0_i32_0 = arith.constant 0 : i32
    %c0_i32_1 = arith.constant 0 : i32
    return %arg0, %c0_i32, %c0_i32_0 : i32, i32, i32
  }
  func.func @transform_1(%arg0: i32, %arg1: i32, %arg2: memref<2xi32, #tpu.memory_space<smem>>) -> (i32, i32, i32) {
    %c0_i32 = arith.constant 0 : i32
    %c0_i32_0 = arith.constant 0 : i32
    %c0_i32_1 = arith.constant 0 : i32
    return %arg1, %c0_i32, %c0_i32_0 : i32, i32, i32
  }
  func.func @transform_2(%arg0: i32, %arg1: i32, %arg2: memref<2xi32, #tpu.memory_space<smem>>) -> (i32, i32, i32) {
    %c0_i32 = arith.constant 0 : i32
    %c0_i32_0 = arith.constant 0 : i32
    %c0_i32_1 = arith.constant 0 : i32
    return %arg1, %c0_i32, %c0_i32_0 : i32, i32, i32
  }
  func.func @transform_3(%arg0: i32, %arg1: i32, %arg2: memref<2xi32, #tpu.memory_space<smem>>) -> (i32, i32, i32) {
    %c0_i32 = arith.constant 0 : i32
    %c0_i32_0 = arith.constant 0 : i32
    %c0_i32_1 = arith.constant 0 : i32
    return %arg1, %c0_i32, %c0_i32_0 : i32, i32, i32
  }
  func.func @transform_4(%arg0: i32, %arg1: i32, %arg2: memref<2xi32, #tpu.memory_space<smem>>) -> (i32, i32, i32) {
    %c0_i32 = arith.constant 0 : i32
    %c0_i32_0 = arith.constant 0 : i32
    %c0_i32_1 = arith.constant 0 : i32
    return %arg1, %c0_i32, %c0_i32_0 : i32, i32, i32
  }
  func.func @transform_5(%arg0: i32, %arg1: i32, %arg2: memref<2xi32, #tpu.memory_space<smem>>) -> (i32, i32, i32) {
    %c0_i32 = arith.constant 0 : i32
    %c0_i32_0 = arith.constant 0 : i32
    %c0_i32_1 = arith.constant 0 : i32
    return %arg1, %c0_i32, %c0_i32_0 : i32, i32, i32
  }
  func.func @transform_6(%arg0: i32, %arg1: i32, %arg2: memref<2xi32, #tpu.memory_space<smem>>) -> (i32, i32, i32) {
    %c0_i32 = arith.constant 0 : i32
    %c0_i32_0 = arith.constant 0 : i32
    %c0_i32_1 = arith.constant 0 : i32
    return %arg1, %c0_i32, %c0_i32_0 : i32, i32, i32
  }
  func.func @transform_7(%arg0: i32, %arg1: i32, %arg2: memref<2xi32, #tpu.memory_space<smem>>) -> (i32, i32, i32) {
    %c0_i32 = arith.constant 0 : i32
    %c0_i32_0 = arith.constant 0 : i32
    %c0_i32_1 = arith.constant 0 : i32
    return %arg1, %c0_i32, %c0_i32_0 : i32, i32, i32
  }
  func.func @transform_8(%arg0: i32, %arg1: i32, %arg2: memref<2xi32, #tpu.memory_space<smem>>) -> (i32, i32, i32) {
    %c0_i32 = arith.constant 0 : i32
    %c0_i32_0 = arith.constant 0 : i32
    %c0_i32_1 = arith.constant 0 : i32
    return %arg1, %c0_i32, %c0_i32_0 : i32, i32, i32
  }
  func.func @transform_9(%arg0: i32, %arg1: i32, %arg2: memref<2xi32, #tpu.memory_space<smem>>) -> (i32, i32, i32) {
    %c0_i32 = arith.constant 0 : i32
    %c0_i32_0 = arith.constant 0 : i32
    %c0_i32_1 = arith.constant 0 : i32
    return %arg1, %c0_i32, %c0_i32_0 : i32, i32, i32
  }
  func.func @transform_10(%arg0: i32, %arg1: i32, %arg2: memref<2xi32, #tpu.memory_space<smem>>) -> (i32, i32, i32) {
    %c0_i32 = arith.constant 0 : i32
    %c0_i32_0 = arith.constant 0 : i32
    %c0_i32_1 = arith.constant 0 : i32
    return %arg1, %c0_i32, %c0_i32_0 : i32, i32, i32
  }
  func.func @transform_11(%arg0: i32, %arg1: i32, %arg2: memref<2xi32, #tpu.memory_space<smem>>) -> (i32, i32, i32) {
    %c0_i32 = arith.constant 0 : i32
    %c0_i32_0 = arith.constant 0 : i32
    %c0_i32_1 = arith.constant 0 : i32
    return %arg1, %c0_i32, %c0_i32_0 : i32, i32, i32
  }
  func.func @transform_12(%arg0: i32, %arg1: i32, %arg2: memref<2xi32, #tpu.memory_space<smem>>) -> (i32, i32, i32) {
    %c0_i32 = arith.constant 0 : i32
    %c0_i32_0 = arith.constant 0 : i32
    %c0_i32_1 = arith.constant 0 : i32
    return %arg1, %c0_i32, %c0_i32_0 : i32, i32, i32
  }
  func.func @transform_13(%arg0: i32, %arg1: i32, %arg2: memref<2xi32, #tpu.memory_space<smem>>) -> (i32, i32, i32) {
    %c0_i32 = arith.constant 0 : i32
    %c0_i32_0 = arith.constant 0 : i32
    %c0_i32_1 = arith.constant 0 : i32
    return %arg0, %c0_i32, %c0_i32_0 : i32, i32, i32
  }
}

</mosaic_0001>

<llo_original>
// kernel: tpu_custom_call.1
$region0: #{tpu_custom_call.1}
  #allocation0 [shape = 'u32[]', space=smem, size = 0x4, offset = 0x4, fixed_abs, tag = 'smem constant byte address 0x4 - core index']
  #allocation1 [shape = 'u32[144,128]{1,0:T(1,128)}', space=vmem, size = 0x12000, scoped, tag = 'internal scratch']
  #allocation2 [shape = 'f32[8,32]{1,0:T(8,128)}', space=vmem, size = 0x1000, scoped, tag = 'scratch operand']
  #allocation3 [shape = 'f32[8,32]{1,0:T(8,128)}', space=vmem, size = 0x1000, scoped, tag = 'scratch operand']
  #allocation4 [shape = 'f32[1,8]{1,0:T(1,128)}', space=vmem, size = 0x200, scoped, tag = 'scratch operand']
  #allocation5 [shape = 's32[1]{0}', space=sflag, size = 0x4, scoped, tag = 'scoped memory for tpu_custom_call.1']
  #allocation6 [shape = 'u8[512]{0}', space=smem, size = 0x200, scoped, tag = 'prefetched SMEM operand 0']
  %s0 = inlined_call_operand.hbm [shape: s32[2], index: 0, kind: input, shape index: {}]
  %s1 = inlined_call_operand.hbm [shape: f32[2,8,32], index: 1, kind: input, shape index: {}]
  %s2 = inlined_call_operand.vmem [shape: bf16[2,32,96], index: 2, kind: input, shape index: {}]
  %s3 = inlined_call_operand.vmem [shape: f32[2,1,96], index: 3, kind: input, shape index: {}]
  %s4 = inlined_call_operand.vmem [shape: bf16[2,32,32], index: 4, kind: input, shape index: {}]
  %s5 = inlined_call_operand.vmem [shape: f32[2,1,32], index: 5, kind: input, shape index: {}]
  %s6 = inlined_call_operand.vmem [shape: f32[2,1,32], index: 6, kind: input, shape index: {}]
  %s7 = inlined_call_operand.vmem [shape: f32[2,1,32], index: 7, kind: input, shape index: {}]
  %s8 = inlined_call_operand.vmem [shape: bf16[2,32,64], index: 8, kind: input, shape index: {}]
  %s9 = inlined_call_operand.vmem [shape: f32[2,1,64], index: 9, kind: input, shape index: {}]
  %s10 = inlined_call_operand.vmem [shape: bf16[2,64,32], index: 10, kind: input, shape index: {}]
  %s11 = inlined_call_operand.vmem [shape: f32[2,1,32], index: 11, kind: input, shape index: {}]
  %s12 = inlined_call_operand.vmem [shape: f32[2,1,32], index: 12, kind: input, shape index: {}]
  %s13 = inlined_call_operand.vmem [shape: f32[2,1,32], index: 13, kind: input, shape index: {}]
  %s14 = inlined_call_operand.hbm [shape: f32[2,8,32], index: 14, kind: output, shape index: {}]
  %s15 = sld [smem:[#allocation0]]
  $region97: #{tpu_custom_call.1} parent=0
    _
  %s17 = ssub.s32 1, %s15
  %s18 = scalar_select 0, %s17, %s15
  %20 = dma.hbm_to_smem %s0, 16, [#allocation6], [#allocation5]
  %21 = dma.done [#allocation5], 16
  %22 = sfence
  $region1: #{tpu_custom_call.1} parent=0
    #allocation7 [shape = 'u8[8192]{0}', space=vmem, size = 0x2000, scoped, tag = 'input window, operand 1']
    #allocation8 [shape = 's32[2]{0}', space=sflag, size = 0x8, scoped, tag = 'scoped memory for tpu_custom_call.1']
    #allocation9 [shape = 's32[2]{0}', space=sflag, size = 0x8, scoped, tag = 'scoped memory for tpu_custom_call.1']
    #allocation10 [shape = 'u8[8192]{0}', space=vmem, size = 0x2000, scoped, tag = 'output window, operand 0']
    %23 = vsyncpa [#allocation8], 0
    %s24 = scalar_lea.sflag [#allocation8], 1
    %25 = vsyncpa %s24, 0
    %26 = vsyncpa [#allocation9], 0
    %s27 = scalar_lea.sflag [#allocation9], 1
    %28 = vsyncpa %s27, 0
    loop: start=0, step=1, limit=6
    $region2: #{tpu_custom_call.1} parent=1 // loop_pre_header
      _
    $region3: #{tpu_custom_call.1} parent=1 // loop_header
      %s30 = sphi 0, %s34
      %p31 = scmp.ge.s32.totalorder %s30, 6
      %s37 = sphi 0, %s49
      %s38 = sphi 0, %s45
      %s39 = sphi 0, %s37
      %s40 = sphi 0, %s38
      %s41 = sphi 0, %s39
      %s42 = sphi 0, %s40
      %s52 = sphi 0, %s54
      %s55 = sphi 0, %s52
      %s56 = sphi 0, %s55
      %s72 = sphi 0, %s56
      %s78 = sphi 0, %s80
      %s81 = sphi 0, %s78
      %s82 = sphi 0, %s81
      %s98 = sphi 0, %s82
      %s104 = sphi 0, %s106
      %s107 = sphi 0, %s104
      %s108 = sphi 0, %s107
      %s124 = sphi 0, %s108
      %s130 = sphi 0, %s132
      %s133 = sphi 0, %s130
      %s134 = sphi 0, %s133
      %s150 = sphi 0, %s134
      %s156 = sphi 0, %s158
      %s159 = sphi 0, %s156
      %s160 = sphi 0, %s159
      %s176 = sphi 0, %s160
      %s182 = sphi 0, %s184
      %s185 = sphi 0, %s182
      %s186 = sphi 0, %s185
      %s202 = sphi 0, %s186
      %s208 = sphi 0, %s210
      %s211 = sphi 0, %s208
      %s212 = sphi 0, %s211
      %s228 = sphi 0, %s212
      %s234 = sphi 0, %s236
      %s237 = sphi 0, %s234
      %s238 = sphi 0, %s237
      %s254 = sphi 0, %s238
      %s260 = sphi 0, %s262
      %s263 = sphi 0, %s260
      %s264 = sphi 0, %s263
      %s280 = sphi 0, %s264
      %s286 = sphi 0, %s288
      %s289 = sphi 0, %s286
      %s290 = sphi 0, %s289
      %s306 = sphi 0, %s290
      %s312 = sphi 0, %s314
      %s315 = sphi 0, %s312
      %s316 = sphi 0, %s315
      %s332 = sphi 0, %s316
      %s338 = sphi 0, %s340
      %s341 = sphi 0, %s338
      %s342 = sphi 0, %s341
      %s358 = sphi 0, %s342
      %s364 = sphi 0, %s366
      %s367 = sphi 0, %s364
      %s368 = sphi 0, %s367
      %s384 = sphi 0, %s368
      %s390 = sphi 0, %s392
      %s393 = sphi 0, %s390
      %s394 = sphi 0, %s393
      %s410 = sphi 0, %s394
    $region4: #{tpu_custom_call.1} parent=1 // loop_header_branch
      %33 = sbr.rel (%p31) target = $region8
    $region5: #{tpu_custom_call.1} parent=1 // loop_body
      %s35 = ssub.s32 %s30, 1
      %s36 = ssub.s32 %s30, 2
      %s43 = sadd.s32 1, %s38
      %p44 = scmp.ge.s32.totalorder %s43, 2
      %s45 = scalar_select %p44, 0, %s43
      %s46 = sadd.s32 1, %s37
      %s47 = scalar_select %p44, %s46, %s37
      %p48 = scmp.ge.s32.totalorder %s47, 2
      %s49 = scalar_select %p48, 0, %s47
      %s50 = ssub.s32 %s37, %s49
      %p51 = scmp.eq.s32.totalorder %s50, 0
      %s53 = sadd.s32 %s52, 1
      %s54 = scalar_select %p51, %s52, %s53
      %p57 = pneg %p51
      %p58 = scmp.eq.s32.totalorder %s30, 3
      %p59 = por %p57, %p58
      %p60 = scmp.ne.s32.totalorder %s52, %s55
      %p61 = scmp.eq.s32.totalorder %s30, 0
      %p62 = por %p60, %p61
      %p63 = scmp.ne.s32.totalorder %s52, %s55
      %p64 = scmp.eq.s32.totalorder %s35, 3
      %p65 = por %p63, %p64
      %p66 = scmp.ne.s32.totalorder %s55, %s56
      %p67 = scmp.eq.s32.totalorder %s35, 0
      %p68 = por %p66, %p67
      %p69 = scmp.ne.s32.totalorder %s55, %s56
      %p70 = scmp.eq.s32.totalorder %s36, 3
      %p71 = por %p69, %p70
      %p73 = scmp.ne.s32.totalorder %s56, %s72
      %p74 = scmp.eq.s32.totalorder %s36, 0
      %p75 = por %p73, %p74
      %s76 = ssub.s32 %s38, %s45
      %p77 = scmp.eq.s32.totalorder %s76, 0
      %s79 = sadd.s32 %s78, 1
      %s80 = scalar_select %p77, %s78, %s79
      %p83 = pneg %p77
      %p84 = scmp.eq.s32.totalorder %s30, 3
      %p85 = por %p83, %p84
      %p86 = scmp.ne.s32.totalorder %s78, %s81
      %p87 = scmp.eq.s32.totalorder %s30, 0
      %p88 = por %p86, %p87
      %p89 = scmp.ne.s32.totalorder %s78, %s81
      %p90 = scmp.eq.s32.totalorder %s35, 3
      %p91 = por %p89, %p90
      %p92 = scmp.ne.s32.totalorder %s81, %s82
      %p93 = scmp.eq.s32.totalorder %s35, 0
      %p94 = por %p92, %p93
      %p95 = scmp.ne.s32.totalorder %s81, %s82
      %p96 = scmp.eq.s32.totalorder %s36, 3
      %p97 = por %p95, %p96
      %p99 = scmp.ne.s32.totalorder %s82, %s98
      %p100 = scmp.eq.s32.totalorder %s36, 0
      %p101 = por %p99, %p100
      %s102 = ssub.s32 %s38, %s45
      %p103 = scmp.eq.s32.totalorder %s102, 0
      %s105 = sadd.s32 %s104, 1
      %s106 = scalar_select %p103, %s104, %s105
      %p109 = pneg %p103
      %p110 = scmp.eq.s32.totalorder %s30, 3
      %p111 = por %p109, %p110
      %p112 = scmp.ne.s32.totalorder %s104, %s107
      %p113 = scmp.eq.s32.totalorder %s30, 0
      %p114 = por %p112, %p113
      %p115 = scmp.ne.s32.totalorder %s104, %s107
      %p116 = scmp.eq.s32.totalorder %s35, 3
      %p117 = por %p115, %p116
      %p118 = scmp.ne.s32.totalorder %s107, %s108
      %p119 = scmp.eq.s32.totalorder %s35, 0
      %p120 = por %p118, %p119
      %p121 = scmp.ne.s32.totalorder %s107, %s108
      %p122 = scmp.eq.s32.totalorder %s36, 3
      %p123 = por %p121, %p122
      %p125 = scmp.ne.s32.totalorder %s108, %s124
      %p126 = scmp.eq.s32.totalorder %s36, 0
      %p127 = por %p125, %p126
      %s128 = ssub.s32 %s38, %s45
      %p129 = scmp.eq.s32.totalorder %s128, 0
      %s131 = sadd.s32 %s130, 1
      %s132 = scalar_select %p129, %s130, %s131
      %p135 = pneg %p129
      %p136 = scmp.eq.s32.totalorder %s30, 3
      %p137 = por %p135, %p136
      %p138 = scmp.ne.s32.totalorder %s130, %s133
      %p139 = scmp.eq.s32.totalorder %s30, 0
      %p140 = por %p138, %p139
      %p141 = scmp.ne.s32.totalorder %s130, %s133
      %p142 = scmp.eq.s32.totalorder %s35, 3
      %p143 = por %p141, %p142
      %p144 = scmp.ne.s32.totalorder %s133, %s134
      %p145 = scmp.eq.s32.totalorder %s35, 0
      %p146 = por %p144, %p145
      %p147 = scmp.ne.s32.totalorder %s133, %s134
      %p148 = scmp.eq.s32.totalorder %s36, 3
      %p149 = por %p147, %p148
      %p151 = scmp.ne.s32.totalorder %s134, %s150
      %p152 = scmp.eq.s32.totalorder %s36, 0
      %p153 = por %p151, %p152
      %s154 = ssub.s32 %s38, %s45
      %p155 = scmp.eq.s32.totalorder %s154, 0
      %s157 = sadd.s32 %s156, 1
      %s158 = scalar_select %p155, %s156, %s157
      %p161 = pneg %p155
      %p162 = scmp.eq.s32.totalorder %s30, 3
      %p163 = por %p161, %p162
      %p164 = scmp.ne.s32.totalorder %s156, %s159
      %p165 = scmp.eq.s32.totalorder %s30, 0
      %p166 = por %p164, %p165
      %p167 = scmp.ne.s32.totalorder %s156, %s159
      %p168 = scmp.eq.s32.totalorder %s35, 3
      %p169 = por %p167, %p168
      %p170 = scmp.ne.s32.totalorder %s159, %s160
      %p171 = scmp.eq.s32.totalorder %s35, 0
      %p172 = por %p170, %p171
      %p173 = scmp.ne.s32.totalorder %s159, %s160
      %p174 = scmp.eq.s32.totalorder %s36, 3
      %p175 = por %p173, %p174
      %p177 = scmp.ne.s32.totalorder %s160, %s176
      %p178 = scmp.eq.s32.totalorder %s36, 0
      %p179 = por %p177, %p178
      %s180 = ssub.s32 %s38, %s45
      %p181 = scmp.eq.s32.totalorder %s180, 0
      %s183 = sadd.s32 %s182, 1
      %s184 = scalar_select %p181, %s182, %s183
      %p187 = pneg %p181
      %p188 = scmp.eq.s32.totalorder %s30, 3
      %p189 = por %p187, %p188
      %p190 = scmp.ne.s32.totalorder %s182, %s185
      %p191 = scmp.eq.s32.totalorder %s30, 0
      %p192 = por %p190, %p191
      %p193 = scmp.ne.s32.totalorder %s182, %s185
      %p194 = scmp.eq.s32.totalorder %s35, 3
      %p195 = por %p193, %p194
      %p196 = scmp.ne.s32.totalorder %s185, %s186
      %p197 = scmp.eq.s32.totalorder %s35, 0
      %p198 = por %p196, %p197
      %p199 = scmp.ne.s32.totalorder %s185, %s186
      %p200 = scmp.eq.s32.totalorder %s36, 3
      %p201 = por %p199, %p200
      %p203 = scmp.ne.s32.totalorder %s186, %s202
      %p204 = scmp.eq.s32.totalorder %s36, 0
      %p205 = por %p203, %p204
      %s206 = ssub.s32 %s38, %s45
      %p207 = scmp.eq.s32.totalorder %s206, 0
      %s209 = sadd.s32 %s208, 1
      %s210 = scalar_select %p207, %s208, %s209
      %p213 = pneg %p207
      %p214 = scmp.eq.s32.totalorder %s30, 3
      %p215 = por %p213, %p214
      %p216 = scmp.ne.s32.totalorder %s208, %s211
      %p217 = scmp.eq.s32.totalorder %s30, 0
      %p218 = por %p216, %p217
      %p219 = scmp.ne.s32.totalorder %s208, %s211
      %p220 = scmp.eq.s32.totalorder %s35, 3
      %p221 = por %p219, %p220
      %p222 = scmp.ne.s32.totalorder %s211, %s212
      %p223 = scmp.eq.s32.totalorder %s35, 0
      %p224 = por %p222, %p223
      %p225 = scmp.ne.s32.totalorder %s211, %s212
      %p226 = scmp.eq.s32.totalorder %s36, 3
      %p227 = por %p225, %p226
      %p229 = scmp.ne.s32.totalorder %s212, %s228
      %p230 = scmp.eq.s32.totalorder %s36, 0
      %p231 = por %p229, %p230
      %s232 = ssub.s32 %s38, %s45
      %p233 = scmp.eq.s32.totalorder %s232, 0
      %s235 = sadd.s32 %s234, 1
      %s236 = scalar_select %p233, %s234, %s235
      %p239 = pneg %p233
      %p240 = scmp.eq.s32.totalorder %s30, 3
      %p241 = por %p239, %p240
      %p242 = scmp.ne.s32.totalorder %s234, %s237
      %p243 = scmp.eq.s32.totalorder %s30, 0
      %p244 = por %p242, %p243
      %p245 = scmp.ne.s32.totalorder %s234, %s237
      %p246 = scmp.eq.s32.totalorder %s35, 3
      %p247 = por %p245, %p246
      %p248 = scmp.ne.s32.totalorder %s237, %s238
      %p249 = scmp.eq.s32.totalorder %s35, 0
      %p250 = por %p248, %p249
      %p251 = scmp.ne.s32.totalorder %s237, %s238
      %p252 = scmp.eq.s32.totalorder %s36, 3
      %p253 = por %p251, %p252
      %p255 = scmp.ne.s32.totalorder %s238, %s254
      %p256 = scmp.eq.s32.totalorder %s36, 0
      %p257 = por %p255, %p256
      %s258 = ssub.s32 %s38, %s45
      %p259 = scmp.eq.s32.totalorder %s258, 0
      %s261 = sadd.s32 %s260, 1
      %s262 = scalar_select %p259, %s260, %s261
      %p265 = pneg %p259
      %p266 = scmp.eq.s32.totalorder %s30, 3
      %p267 = por %p265, %p266
      %p268 = scmp.ne.s32.totalorder %s260, %s263
      %p269 = scmp.eq.s32.totalorder %s30, 0
      %p270 = por %p268, %p269
      %p271 = scmp.ne.s32.totalorder %s260, %s263
      %p272 = scmp.eq.s32.totalorder %s35, 3
      %p273 = por %p271, %p272
      %p274 = scmp.ne.s32.totalorder %s263, %s264
      %p275 = scmp.eq.s32.totalorder %s35, 0
      %p276 = por %p274, %p275
      %p277 = scmp.ne.s32.totalorder %s263, %s264
      %p278 = scmp.eq.s32.totalorder %s36, 3
      %p279 = por %p277, %p278
      %p281 = scmp.ne.s32.totalorder %s264, %s280
      %p282 = scmp.eq.s32.totalorder %s36, 0
      %p283 = por %p281, %p282
      %s284 = ssub.s32 %s38, %s45
      %p285 = scmp.eq.s32.totalorder %s284, 0
      %s287 = sadd.s32 %s286, 1
      %s288 = scalar_select %p285, %s286, %s287
      %p291 = pneg %p285
      %p292 = scmp.eq.s32.totalorder %s30, 3
      %p293 = por %p291, %p292
      %p294 = scmp.ne.s32.totalorder %s286, %s289
      %p295 = scmp.eq.s32.totalorder %s30, 0
      %p296 = por %p294, %p295
      %p297 = scmp.ne.s32.totalorder %s286, %s289
      %p298 = scmp.eq.s32.totalorder %s35, 3
      %p299 = por %p297, %p298
      %p300 = scmp.ne.s32.totalorder %s289, %s290
      %p301 = scmp.eq.s32.totalorder %s35, 0
      %p302 = por %p300, %p301
      %p303 = scmp.ne.s32.totalorder %s289, %s290
      %p304 = scmp.eq.s32.totalorder %s36, 3
      %p305 = por %p303, %p304
      %p307 = scmp.ne.s32.totalorder %s290, %s306
      %p308 = scmp.eq.s32.totalorder %s36, 0
      %p309 = por %p307, %p308
      %s310 = ssub.s32 %s38, %s45
      %p311 = scmp.eq.s32.totalorder %s310, 0
      %s313 = sadd.s32 %s312, 1
      %s314 = scalar_select %p311, %s312, %s313
      %p317 = pneg %p311
      %p318 = scmp.eq.s32.totalorder %s30, 3
      %p319 = por %p317, %p318
      %p320 = scmp.ne.s32.totalorder %s312, %s315
      %p321 = scmp.eq.s32.totalorder %s30, 0
      %p322 = por %p320, %p321
      %p323 = scmp.ne.s32.totalorder %s312, %s315
      %p324 = scmp.eq.s32.totalorder %s35, 3
      %p325 = por %p323, %p324
      %p326 = scmp.ne.s32.totalorder %s315, %s316
      %p327 = scmp.eq.s32.totalorder %s35, 0
      %p328 = por %p326, %p327
      %p329 = scmp.ne.s32.totalorder %s315, %s316
      %p330 = scmp.eq.s32.totalorder %s36, 3
      %p331 = por %p329, %p330
      %p333 = scmp.ne.s32.totalorder %s316, %s332
      %p334 = scmp.eq.s32.totalorder %s36, 0
      %p335 = por %p333, %p334
      %s336 = ssub.s32 %s38, %s45
      %p337 = scmp.eq.s32.totalorder %s336, 0
      %s339 = sadd.s32 %s338, 1
      %s340 = scalar_select %p337, %s338, %s339
      %p343 = pneg %p337
      %p344 = scmp.eq.s32.totalorder %s30, 3
      %p345 = por %p343, %p344
      %p346 = scmp.ne.s32.totalorder %s338, %s341
      %p347 = scmp.eq.s32.totalorder %s30, 0
      %p348 = por %p346, %p347
      %p349 = scmp.ne.s32.totalorder %s338, %s341
      %p350 = scmp.eq.s32.totalorder %s35, 3
      %p351 = por %p349, %p350
      %p352 = scmp.ne.s32.totalorder %s341, %s342
      %p353 = scmp.eq.s32.totalorder %s35, 0
      %p354 = por %p352, %p353
      %p355 = scmp.ne.s32.totalorder %s341, %s342
      %p356 = scmp.eq.s32.totalorder %s36, 3
      %p357 = por %p355, %p356
      %p359 = scmp.ne.s32.totalorder %s342, %s358
      %p360 = scmp.eq.s32.totalorder %s36, 0
      %p361 = por %p359, %p360
      %s362 = ssub.s32 %s38, %s45
      %p363 = scmp.eq.s32.totalorder %s362, 0
      %s365 = sadd.s32 %s364, 1
      %s366 = scalar_select %p363, %s364, %s365
      %p369 = pneg %p363
      %p370 = scmp.eq.s32.totalorder %s30, 3
      %p371 = por %p369, %p370
      %p372 = scmp.ne.s32.totalorder %s364, %s367
      %p373 = scmp.eq.s32.totalorder %s30, 0
      %p374 = por %p372, %p373
      %p375 = scmp.ne.s32.totalorder %s364, %s367
      %p376 = scmp.eq.s32.totalorder %s35, 3
      %p377 = por %p375, %p376
      %p378 = scmp.ne.s32.totalorder %s367, %s368
      %p379 = scmp.eq.s32.totalorder %s35, 0
      %p380 = por %p378, %p379
      %p381 = scmp.ne.s32.totalorder %s367, %s368
      %p382 = scmp.eq.s32.totalorder %s36, 3
      %p383 = por %p381, %p382
      %p385 = scmp.ne.s32.totalorder %s368, %s384
      %p386 = scmp.eq.s32.totalorder %s36, 0
      %p387 = por %p385, %p386
      %s388 = ssub.s32 %s37, %s49
      %p389 = scmp.eq.s32.totalorder %s388, 0
      %s391 = sadd.s32 %s390, 1
      %s392 = scalar_select %p389, %s390, %s391
      %p395 = pneg %p389
      %p396 = scmp.eq.s32.totalorder %s30, 3
      %p397 = por %p395, %p396
      %p398 = scmp.ne.s32.totalorder %s390, %s393
      %p399 = scmp.eq.s32.totalorder %s30, 0
      %p400 = por %p398, %p399
      %p401 = scmp.ne.s32.totalorder %s390, %s393
      %p402 = scmp.eq.s32.totalorder %s35, 3
      %p403 = por %p401, %p402
      %p404 = scmp.ne.s32.totalorder %s393, %s394
      %p405 = scmp.eq.s32.totalorder %s35, 0
      %p406 = por %p404, %p405
      %p407 = scmp.ne.s32.totalorder %s393, %s394
      %p408 = scmp.eq.s32.totalorder %s36, 3
      %p409 = por %p407, %p408
      %p411 = scmp.ne.s32.totalorder %s394, %s410
      %p412 = scmp.eq.s32.totalorder %s36, 0
      %p413 = por %p411, %p412
      %p414 = scmp.le.s32.totalorder 1, %s30
      %p415 = scmp.lt.s32.totalorder %s30, 5
      %p416 = pnand %p414, %p415
      %p417 = pneg %p416
      // Predicated region
      $region9: #{tpu_custom_call.1} parent=5 // pred_check
        _
      $region10: #{tpu_custom_call.1} parent=5 // pred_check_branch
        %419 = sbr.rel (%p416) target = $region12
      $region11: #{tpu_custom_call.1} parent=5 // pred_region
        %s420 = ssub.s32 %s30, 1
      $region12: #{tpu_custom_call.1} parent=5 // pred_fallthru
        _
      %p421 = scmp.lt.s32.totalorder %s30, 4
      // Predicated region
      $region13: #{tpu_custom_call.1} parent=5 // pred_check
        %p422 = pneg %p421
      $region14: #{tpu_custom_call.1} parent=5 // pred_check_branch
        %424 = sbr.rel (%p422) target = $region16
      $region15: #{tpu_custom_call.1} parent=5 // pred_region
        // Predicated region
        $region17: #{tpu_custom_call.1} parent=15 // pred_check
          %p425 = pneg %p62
        $region18: #{tpu_custom_call.1} parent=15 // pred_check_branch
          %427 = sbr.rel (%p425) target = $region20
        $region19: #{tpu_custom_call.1} parent=15 // pred_region
          %s428 = sand.u32 %s52, 1
          %s429 = scalar_lea.sflag [#allocation8], %s428
          %s430 = sand.u32 %s52, 1
          %s431 = smul.addr %s430, 8
          %s432 = scalar_lea.vmem [#allocation7], %s431
          %s434 = ssub.s32 128, 128
          %435 = vsyncadd %s429, %s434
          %s436 = smul.addr %s37, 128
          %s437 = scalar_lea.hbm %s1, %s436
          %s439 = sshll.u32 %s432, 4
          %s440 = int_to_ptr.vmem [resolvable:$true] %s439
          %442 = dma.hbm_to_vmem [thread:$0]  %s437, 128, %s440, %s429
        $region20: #{tpu_custom_call.1} parent=15 // pred_fallthru
          _
        // Predicated region
        $region21: #{tpu_custom_call.1} parent=15 // pred_check
          %p443 = pneg %p88
        $region22: #{tpu_custom_call.1} parent=15 // pred_check_branch
          %445 = sbr.rel (%p443) target = $region24
        $region23: #{tpu_custom_call.1} parent=15 // pred_region
          %p446 = scmp.lt.s32.totalorder %s38, 1
          %s447 = scalar_select %p446, %s38, 1
          %s448 = smul.addr %s447, 4
          %s449 = smul.addr %s448, 4
          %s450 = scalar_lea.vmem %s2, %s449
        $region24: #{tpu_custom_call.1} parent=15 // pred_fallthru
          _
        // Predicated region
        $region25: #{tpu_custom_call.1} parent=15 // pred_check
          %p451 = pneg %p114
        $region26: #{tpu_custom_call.1} parent=15 // pred_check_branch
          %453 = sbr.rel (%p451) target = $region28
        $region27: #{tpu_custom_call.1} parent=15 // pred_region
          %p454 = scmp.lt.s32.totalorder %s38, 1
          %s455 = scalar_select %p454, %s38, 1
          %s456 = scalar_lea.vmem %s3, %s455
        $region28: #{tpu_custom_call.1} parent=15 // pred_fallthru
          _
        // Predicated region
        $region29: #{tpu_custom_call.1} parent=15 // pred_check
          %p457 = pneg %p140
        $region30: #{tpu_custom_call.1} parent=15 // pred_check_branch
          %459 = sbr.rel (%p457) target = $region32
        $region31: #{tpu_custom_call.1} parent=15 // pred_region
          %p460 = scmp.lt.s32.totalorder %s38, 1
          %s461 = scalar_select %p460, %s38, 1
          %s462 = smul.addr %s461, 4
          %s463 = smul.addr %s462, 4
          %s464 = scalar_lea.vmem %s4, %s463
        $region32: #{tpu_custom_call.1} parent=15 // pred_fallthru
          _
        // Predicated region
        $region33: #{tpu_custom_call.1} parent=15 // pred_check
          %p465 = pneg %p166
        $region34: #{tpu_custom_call.1} parent=15 // pred_check_branch
          %467 = sbr.rel (%p465) target = $region36
        $region35: #{tpu_custom_call.1} parent=15 // pred_region
          %p468 = scmp.lt.s32.totalorder %s38, 1
          %s469 = scalar_select %p468, %s38, 1
          %s470 = scalar_lea.vmem %s5, %s469
        $region36: #{tpu_custom_call.1} parent=15 // pred_fallthru
          _
        // Predicated region
        $region37: #{tpu_custom_call.1} parent=15 // pred_check
          %p471 = pneg %p192
        $region38: #{tpu_custom_call.1} parent=15 // pred_check_branch
          %473 = sbr.rel (%p471) target = $region40
        $region39: #{tpu_custom_call.1} parent=15 // pred_region
          %p474 = scmp.lt.s32.totalorder %s38, 1
          %s475 = scalar_select %p474, %s38, 1
          %s476 = scalar_lea.vmem %s6, %s475
        $region40: #{tpu_custom_call.1} parent=15 // pred_fallthru
          _
        // Predicated region
        $region41: #{tpu_custom_call.1} parent=15 // pred_check
          %p477 = pneg %p218
        $region42: #{tpu_custom_call.1} parent=15 // pred_check_branch
          %479 = sbr.rel (%p477) target = $region44
        $region43: #{tpu_custom_call.1} parent=15 // pred_region
          %p480 = scmp.lt.s32.totalorder %s38, 1
          %s481 = scalar_select %p480, %s38, 1
          %s482 = scalar_lea.vmem %s7, %s481
        $region44: #{tpu_custom_call.1} parent=15 // pred_fallthru
          _
        // Predicated region
        $region45: #{tpu_custom_call.1} parent=15 // pred_check
          %p483 = pneg %p244
        $region46: #{tpu_custom_call.1} parent=15 // pred_check_branch
          %485 = sbr.rel (%p483) target = $region48
        $region47: #{tpu_custom_call.1} parent=15 // pred_region
          %p486 = scmp.lt.s32.totalorder %s38, 1
          %s487 = scalar_select %p486, %s38, 1
          %s488 = smul.addr %s487, 4
          %s489 = smul.addr %s488, 4
          %s490 = scalar_lea.vmem %s8, %s489
        $region48: #{tpu_custom_call.1} parent=15 // pred_fallthru
          _
        // Predicated region
        $region49: #{tpu_custom_call.1} parent=15 // pred_check
          %p491 = pneg %p270
        $region50: #{tpu_custom_call.1} parent=15 // pred_check_branch
          %493 = sbr.rel (%p491) target = $region52
        $region51: #{tpu_custom_call.1} parent=15 // pred_region
          %p494 = scmp.lt.s32.totalorder %s38, 1
          %s495 = scalar_select %p494, %s38, 1
          %s496 = scalar_lea.vmem %s9, %s495
        $region52: #{tpu_custom_call.1} parent=15 // pred_fallthru
          _
        // Predicated region
        $region53: #{tpu_custom_call.1} parent=15 // pred_check
          %p497 = pneg %p296
        $region54: #{tpu_custom_call.1} parent=15 // pred_check_branch
          %499 = sbr.rel (%p497) target = $region56
        $region55: #{tpu_custom_call.1} parent=15 // pred_region
          %p500 = scmp.lt.s32.totalorder %s38, 1
          %s501 = scalar_select %p500, %s38, 1
          %s502 = smul.addr %s501, 8
          %s503 = smul.addr %s502, 4
          %s504 = scalar_lea.vmem %s10, %s503
        $region56: #{tpu_custom_call.1} parent=15 // pred_fallthru
          _
        // Predicated region
        $region57: #{tpu_custom_call.1} parent=15 // pred_check
          %p505 = pneg %p322
        $region58: #{tpu_custom_call.1} parent=15 // pred_check_branch
          %507 = sbr.rel (%p505) target = $region60
        $region59: #{tpu_custom_call.1} parent=15 // pred_region
          %p508 = scmp.lt.s32.totalorder %s38, 1
          %s509 = scalar_select %p508, %s38, 1
          %s510 = scalar_lea.vmem %s11, %s509
        $region60: #{tpu_custom_call.1} parent=15 // pred_fallthru
          _
        // Predicated region
        $region61: #{tpu_custom_call.1} parent=15 // pred_check
          %p511 = pneg %p348
        $region62: #{tpu_custom_call.1} parent=15 // pred_check_branch
          %513 = sbr.rel (%p511) target = $region64
        $region63: #{tpu_custom_call.1} parent=15 // pred_region
          %p514 = scmp.lt.s32.totalorder %s38, 1
          %s515 = scalar_select %p514, %s38, 1
          %s516 = scalar_lea.vmem %s12, %s515
        $region64: #{tpu_custom_call.1} parent=15 // pred_fallthru
          _
        // Predicated region
        $region65: #{tpu_custom_call.1} parent=15 // pred_check
          %p517 = pneg %p374
        $region66: #{tpu_custom_call.1} parent=15 // pred_check_branch
          %519 = sbr.rel (%p517) target = $region68
        $region67: #{tpu_custom_call.1} parent=15 // pred_region
          %p520 = scmp.lt.s32.totalorder %s38, 1
          %s521 = scalar_select %p520, %s38, 1
          %s522 = scalar_lea.vmem %s13, %s521
        $region68: #{tpu_custom_call.1} parent=15 // pred_fallthru
          _
      $region16: #{tpu_custom_call.1} parent=5 // pred_fallthru
        _
      %p523 = scmp.le.s32.totalorder 1, %s30
      %p524 = scmp.lt.s32.totalorder %s30, 5
      %p525 = pnand %p523, %p524
      %p526 = pneg %p525
      // Predicated region
      $region69: #{tpu_custom_call.1} parent=5 // pred_check
        _
      $region70: #{tpu_custom_call.1} parent=5 // pred_check_branch
        %528 = sbr.rel (%p525) target = $region72
      $region71: #{tpu_custom_call.1} parent=5 // pred_region
        %s529 = ssub.s32 %s30, 1
        %s530 = sand.u32 %s55, 1
        %s531 = scalar_lea.sflag [#allocation8], %s530
        %s532 = sand.u32 %s55, 1
        %s533 = smul.addr %s532, 8
        %s534 = scalar_lea.vmem [#allocation7], %s533
        // Predicated region
        $region73: #{tpu_custom_call.1} parent=71 // pred_check
          %p535 = pneg %p68
        $region74: #{tpu_custom_call.1} parent=71 // pred_check_branch
          %537 = sbr.rel (%p535) target = $region76
        $region75: #{tpu_custom_call.1} parent=71 // pred_region
          %538 = dma.done %s531, 128
        $region76: #{tpu_custom_call.1} parent=71 // pred_fallthru
          _
        %s539 = sand.u32 %s55, 1
        %s540 = scalar_lea.sflag [#allocation8], %s539
        %s541 = sand.u32 %s55, 1
        %s542 = smul.addr %s541, 8
        %s543 = scalar_lea.vmem [#allocation7], %s542
        %p544 = pneg %p68
        %p545 = pneg %p65
        %p546 = scmp.lt.s32.totalorder %s40, 1
        %s547 = scalar_select %p546, %s40, 1
        %s548 = smul.addr %s547, 4
        %s549 = smul.addr %s548, 4
        %s550 = scalar_lea.vmem %s2, %s549
        %p551 = pneg %p94
        %p552 = pneg %p91
        %p553 = scmp.lt.s32.totalorder %s40, 1
        %s554 = scalar_select %p553, %s40, 1
        %s555 = scalar_lea.vmem %s3, %s554
        %p556 = pneg %p120
        %p557 = pneg %p117
        %p558 = scmp.lt.s32.totalorder %s40, 1
        %s559 = scalar_select %p558, %s40, 1
        %s560 = smul.addr %s559, 4
        %s561 = smul.addr %s560, 4
        %s562 = scalar_lea.vmem %s4, %s561
        %p563 = pneg %p146
        %p564 = pneg %p143
        %p565 = scmp.lt.s32.totalorder %s40, 1
        %s566 = scalar_select %p565, %s40, 1
        %s567 = scalar_lea.vmem %s5, %s566
        %p568 = pneg %p172
        %p569 = pneg %p169
        %p570 = scmp.lt.s32.totalorder %s40, 1
        %s571 = scalar_select %p570, %s40, 1
        %s572 = scalar_lea.vmem %s6, %s571
        %p573 = pneg %p198
        %p574 = pneg %p195
        %p575 = scmp.lt.s32.totalorder %s40, 1
        %s576 = scalar_select %p575, %s40, 1
        %s577 = scalar_lea.vmem %s7, %s576
        %p578 = pneg %p224
        %p579 = pneg %p221
        %p580 = scmp.lt.s32.totalorder %s40, 1
        %s581 = scalar_select %p580, %s40, 1
        %s582 = smul.addr %s581, 4
        %s583 = smul.addr %s582, 4
        %s584 = scalar_lea.vmem %s8, %s583
        %p585 = pneg %p250
        %p586 = pneg %p247
        %p587 = scmp.lt.s32.totalorder %s40, 1
        %s588 = scalar_select %p587, %s40, 1
        %s589 = scalar_lea.vmem %s9, %s588
        %p590 = pneg %p276
        %p591 = pneg %p273
        %p592 = scmp.lt.s32.totalorder %s40, 1
        %s593 = scalar_select %p592, %s40, 1
        %s594 = smul.addr %s593, 8
        %s595 = smul.addr %s594, 4
        %s596 = scalar_lea.vmem %s10, %s595
        %p597 = pneg %p302
        %p598 = pneg %p299
        %p599 = scmp.lt.s32.totalorder %s40, 1
        %s600 = scalar_select %p599, %s40, 1
        %s601 = scalar_lea.vmem %s11, %s600
        %p602 = pneg %p328
        %p603 = pneg %p325
        %p604 = scmp.lt.s32.totalorder %s40, 1
        %s605 = scalar_select %p604, %s40, 1
        %s606 = scalar_lea.vmem %s12, %s605
        %p607 = pneg %p354
        %p608 = pneg %p351
        %p609 = scmp.lt.s32.totalorder %s40, 1
        %s610 = scalar_select %p609, %s40, 1
        %s611 = scalar_lea.vmem %s13, %s610
        %p612 = pneg %p380
        %p613 = pneg %p377
        %p614 = pneg %p406
        %p615 = pneg %p403
        %s616 = sand.u32 %s393, 1
        %s617 = scalar_lea.sflag [#allocation9], %s616
        %s618 = sand.u32 %s393, 1
        %s619 = smul.addr %s618, 8
        %s620 = scalar_lea.vmem [#allocation10], %s619
        %p621 = scmp.lt.s32.totalorder %s40, 1
        %s622 = scalar_select %p621, %s40, 1
        %s623 = smul.addr %s622, 4
        %s624 = smul.addr %s623, 4
        %s625 = scalar_lea.vmem %s2, %s624
        %p626 = scmp.lt.s32.totalorder %s40, 1
        %s627 = scalar_select %p626, %s40, 1
        %s628 = scalar_lea.vmem %s3, %s627
        %p629 = scmp.lt.s32.totalorder %s40, 1
        %s630 = scalar_select %p629, %s40, 1
        %s631 = smul.addr %s630, 4
        %s632 = smul.addr %s631, 4
        %s633 = scalar_lea.vmem %s4, %s632
        %p634 = scmp.lt.s32.totalorder %s40, 1
        %s635 = scalar_select %p634, %s40, 1
        %s636 = scalar_lea.vmem %s5, %s635
        %p637 = scmp.lt.s32.totalorder %s40, 1
        %s638 = scalar_select %p637, %s40, 1
        %s639 = scalar_lea.vmem %s6, %s638
        %p640 = scmp.lt.s32.totalorder %s40, 1
        %s641 = scalar_select %p640, %s40, 1
        %s642 = scalar_lea.vmem %s7, %s641
        %p643 = scmp.lt.s32.totalorder %s40, 1
        %s644 = scalar_select %p643, %s40, 1
        %s645 = smul.addr %s644, 4
        %s646 = smul.addr %s645, 4
        %s647 = scalar_lea.vmem %s8, %s646
        %p648 = scmp.lt.s32.totalorder %s40, 1
        %s649 = scalar_select %p648, %s40, 1
        %s650 = scalar_lea.vmem %s9, %s649
        %p651 = scmp.lt.s32.totalorder %s40, 1
        %s652 = scalar_select %p651, %s40, 1
        %s653 = smul.addr %s652, 8
        %s654 = smul.addr %s653, 4
        %s655 = scalar_lea.vmem %s10, %s654
        %p656 = scmp.lt.s32.totalorder %s40, 1
        %s657 = scalar_select %p656, %s40, 1
        %s658 = scalar_lea.vmem %s11, %s657
        %p659 = scmp.lt.s32.totalorder %s40, 1
        %s660 = scalar_select %p659, %s40, 1
        %s661 = scalar_lea.vmem %s12, %s660
        %p662 = scmp.lt.s32.totalorder %s40, 1
        %s663 = scalar_select %p662, %s40, 1
        %s664 = scalar_lea.vmem %s13, %s663
        %p666 = scmp.eq.s32.totalorder %s40, 0
        // Predicated region
        $region77: #{tpu_custom_call.1} parent=71 // pred_check
          %p667 = pneg %p666
        $region78: #{tpu_custom_call.1} parent=71 // pred_check_branch
          %669 = sbr.rel (%p667) target = $region80
        $region79: #{tpu_custom_call.1} parent=71 // pred_region
          %v670 = vld [vmem:[%s534] sm:$0xff]
          %vm671 = vcmask 261120
          %672 = vst.msk [vmem:[#allocation2] sm:$0xff] %vm671, %v670
          %v673 = vlaneseq
          %v674 = vand.u32 %v673, 127
          %s675 = sld [smem:[#allocation6 + %s39]]
          %v676 = vstv %s675
          %vm677 = vcmp.lt.s32.totalorder %v674, %v676
          %v678 = vsel %vm677, 0.0, -1e+09
          %vm679 = vcmask 57344
          %680 = vst.msk [vmem:[#allocation4] sm:$0x1] %vm679, %v678
        $region80: #{tpu_custom_call.1} parent=71 // pred_fallthru
          _
        %v681 = vld [vmem:[#allocation2] sm:$0xff]
        %v682 = vpack.c.bf16 %v681, %v681
        %v683 = vld [vmem:[%s625] sm:$0xf]
        %v684 = vld [vmem:[%s625 + $0x4] sm:$0xf]
        %v685 = vld [vmem:[%s625 + $0x8] sm:$0xf]
        %v686 = vld [vmem:[%s625 + $0xc] sm:$0xf]
        %v687 = vld [vmem:[%s628] sm:$0x1]
        %v689 = vlaneseq
        %v690 = vshrl.u32 %v689, 7
        %v691 = vsub.s32 0, %v690
        %v692 = vrot.slane %v687, %v691
        %v698 = vunpack.c.l.b16 %v683
        %v699 = vunpack.c.l.b16 %v684
        %v700 = vunpack.c.l.b16 %v685
        %v701 = vunpack.c.l.b16 %v686
        %v702 = vpack.c.b16 %v699, %v698
        %v703 = vpack.c.b16 %v701, %v700
        %vm706 = vcmask 261120
        %v708 = vsel %vm706, %v682, 0
        %710 = vmatprep.subr.bf16.mxu0 0
        %711 = vmatpush1.bf16.msra.mxu0 0
        %712 = vmatprep.subr.bf16.mxu0 0
        %713 = vmatpush1.bf16.msra.mxu0 0
        %714 = vmatprep.subr.bf16.mxu0 0
        %715 = vmatpush1.bf16.msra.mxu0 0
        %716 = vmatprep.subr.bf16.mxu0 0
        %717 = vmatpush1.bf16.msra.mxu0 0
        %718 = vmatprep.subr.bf16.mxu0 0
        %719 = vmatpush1.bf16.msra.mxu0 0
        %720 = vmatprep.subr.bf16.mxu0 0
        %721 = vmatpush1.bf16.msra.mxu0 0
        %722 = vmatprep.subr.bf16.mxu0 0
        %723 = vmatpush1.bf16.msra.mxu0 %v703
        %724 = vmatprep.subr.bf16.mxu0 0
        %725 = vmatpush1.bf16.msra.mxu0 %v702
        %726 = vmatprep.subr.bf16.mxu0 0
        %727 = vmatpush2.bf16.msra.mxu0 0
        %728 = vmatprep.subr.bf16.mxu0 0
        %729 = vmatpush2.bf16.msra.mxu0 0
        %730 = vmatprep.subr.bf16.mxu0 0
        %731 = vmatpush2.bf16.msra.mxu0 0
        %732 = vmatprep.subr.bf16.mxu0 0
        %733 = vmatpush2.bf16.msra.mxu0 0
        %734 = vmatprep.subr.bf16.mxu0 0
        %735 = vmatpush2.bf16.msra.mxu0 0
        %736 = vmatprep.subr.bf16.mxu0 0
        %737 = vmatpush2.bf16.msra.mxu0 0
        %738 = vmatprep.subr.bf16.mxu0 0
        %739 = vmatpush2.bf16.msra.mxu0 0
        %740 = vmatprep.subr.bf16.mxu0 0
        %741 = vmatpush2.bf16.msra.mxu0 0
        %742 = vmatprep.mubr.bf16.mxu0 0
        %743 = vmatmul.mubr.bf16.gmra.mxu0 %v708
        %v744 = vpop.f32.mrf.mxu0
        %v745 = vadd.f32 %v692, %v744
        %v746 = vpop.f32.mrf.mxu0
        %v747 = vpop.f32.mrf.mxu0
        %v748 = vpop.f32.mrf.mxu0
        %749 = vdwg.mxu0
        %v750 = vld [vmem:[#allocation4] sm:$0x1]
        %v751 = vmul.f32 %v745, 0.35355338
        %v752 = vpack.c.bf16 %v751, %v751
        %v753 = vpack.c.bf16 %v745, %v745
        %v755 = vlaneseq
        %v756 = vshrl.u32 %v755, 7
        %v757 = vsub.s32 0, %v756
        %v758 = vrot.slane %v750, %v757
        %761 = vrot.lane.b32.xlu0 %v753, 96
        %v762 = vpop.permute.xlu0 %761
        %vm763 = vcmask 64512
        %v765 = vsel %vm763, %v752, 0
        %v768 = vsel %vm763, %v762, 0
        %770 = vmatprep.subr.bf16.mxu0 0
        %771 = vmatpush1.bf16.xpose.msra.mxu0 0
        %772 = vmatprep.subr.bf16.mxu0 0
        %773 = vmatpush1.bf16.xpose.msra.mxu0 0
        %774 = vmatprep.subr.bf16.mxu0 0
        %775 = vmatpush1.bf16.xpose.msra.mxu0 0
        %776 = vmatprep.subr.bf16.mxu0 0
        %777 = vmatpush1.bf16.xpose.msra.mxu0 0
        %778 = vmatprep.subr.bf16.mxu0 0
        %779 = vmatpush1.bf16.xpose.msra.mxu0 0
        %780 = vmatprep.subr.bf16.mxu0 0
        %781 = vmatpush1.bf16.xpose.msra.mxu0 0
        %782 = vmatprep.subr.bf16.mxu0 0
        %783 = vmatpush1.bf16.xpose.msra.mxu0 0
        %784 = vmatprep.subr.bf16.mxu0 0
        %785 = vmatpush1.bf16.xpose.msra.mxu0 %v768
        %786 = vmatprep.subr.bf16.mxu0 0
        %787 = vmatpush2.bf16.xpose.msra.mxu0 0
        %788 = vmatprep.subr.bf16.mxu0 0
        %789 = vmatpush2.bf16.xpose.msra.mxu0 0
        %790 = vmatprep.subr.bf16.mxu0 0
        %791 = vmatpush2.bf16.xpose.msra.mxu0 0
        %792 = vmatprep.subr.bf16.mxu0 0
        %793 = vmatpush2.bf16.xpose.msra.mxu0 0
        %794 = vmatprep.subr.bf16.mxu0 0
        %795 = vmatpush2.bf16.xpose.msra.mxu0 0
        %796 = vmatprep.subr.bf16.mxu0 0
        %797 = vmatpush2.bf16.xpose.msra.mxu0 0
        %798 = vmatprep.subr.bf16.mxu0 0
        %799 = vmatpush2.bf16.xpose.msra.mxu0 0
        %800 = vmatprep.subr.bf16.mxu0 0
        %801 = vmatpush2.bf16.xpose.msra.mxu0 0
        %802 = vmatprep.mubr.bf16.mxu0 0
        %803 = vmatmul.mubr.bf16.gmra.mxu0 %v765
        %v804 = vpop.f32.mrf.mxu0
        %v805 = vadd.f32 %v758, %v804
        %v806 = vpop.f32.mrf.mxu0
        %v807 = vpop.f32.mrf.mxu0
        %v808 = vpop.f32.mrf.mxu0
        %809 = vdwg.mxu0
        %v810 = vsel %vm763, %v805, -inf
        %811 = vmax.xlane.f32.xlu0 %v810
        %v812 = vpop.xlane.xlu0 %811
        %v813 = vsub.f32 %v805, %v812
        %v814 = vmul.f32 %v813, 1.442695
        %v815 = vpow.pop %v814
        %v816 = vsel %vm763, %v815, 0.0
        %817 = vadd.xlane.f32.xlu0 %v816
        %v818 = vpop.xlane.xlu0 %817
        %v819 = vrcp.pop %v818
        %v820 = vmul.f32 %v815, %v819
        %v821 = vpack.c.bf16 %v820, %v820
        %822 = vrot.lane.b32.xlu0 %v753, 64
        %v823 = vpop.permute.xlu0 %822
        %v825 = vsel %vm763, %v821, 0
        %vm827 = vcmask 1043456
        %v829 = vsel %vm827, %v823, 0
        %831 = vmatprep.subr.bf16.mxu0 0
        %832 = vmatpush1.bf16.msra.mxu0 0
        %833 = vmatprep.subr.bf16.mxu0 0
        %834 = vmatpush1.bf16.msra.mxu0 0
        %835 = vmatprep.subr.bf16.mxu0 0
        %836 = vmatpush1.bf16.msra.mxu0 0
        %837 = vmatprep.subr.bf16.mxu0 0
        %838 = vmatpush1.bf16.msra.mxu0 0
        %839 = vmatprep.subr.bf16.mxu0 0
        %840 = vmatpush1.bf16.msra.mxu0 0
        %841 = vmatprep.subr.bf16.mxu0 0
        %842 = vmatpush1.bf16.msra.mxu0 0
        %843 = vmatprep.subr.bf16.mxu0 0
        %844 = vmatpush1.bf16.msra.mxu0 0
        %845 = vmatprep.subr.bf16.mxu0 0
        %846 = vmatpush1.bf16.msra.mxu0 %v829
        %847 = vmatprep.subr.bf16.mxu0 0
        %848 = vmatpush2.bf16.msra.mxu0 0
        %849 = vmatprep.subr.bf16.mxu0 0
        %850 = vmatpush2.bf16.msra.mxu0 0
        %851 = vmatprep.subr.bf16.mxu0 0
        %852 = vmatpush2.bf16.msra.mxu0 0
        %853 = vmatprep.subr.bf16.mxu0 0
        %854 = vmatpush2.bf16.msra.mxu0 0
        %855 = vmatprep.subr.bf16.mxu0 0
        %856 = vmatpush2.bf16.msra.mxu0 0
        %857 = vmatprep.subr.bf16.mxu0 0
        %858 = vmatpush2.bf16.msra.mxu0 0
        %859 = vmatprep.subr.bf16.mxu0 0
        %860 = vmatpush2.bf16.msra.mxu0 0
        %861 = vmatprep.subr.bf16.mxu0 0
        %862 = vmatpush2.bf16.msra.mxu0 0
        %863 = vmatprep.mubr.bf16.mxu0 0
        %864 = vmatmul.mubr.bf16.gmra.mxu0 %v825
        %v865 = vpop.f32.mrf.mxu0
        %v866 = vadd.f32 0.0, %v865
        %v867 = vpop.f32.mrf.mxu0
        %v868 = vpop.f32.mrf.mxu0
        %v869 = vpop.f32.mrf.mxu0
        %870 = vdwg.mxu0
        %871 = vst.msk [vmem:[#allocation3] sm:$0xff] %vm763, %v866
        %873 = vrot.lane.b32.xlu0 %v752, 120
        %v874 = vpop.permute.xlu0 %873
        %875 = vrot.lane.b32.xlu0 %v753, 88
        %v876 = vpop.permute.xlu0 %875
        %v878 = vsel %vm763, %v874, 0
        %v881 = vsel %vm763, %v876, 0
        %883 = vmatprep.subr.bf16.mxu0 0
        %884 = vmatpush1.bf16.xpose.msra.mxu0 0
        %885 = vmatprep.subr.bf16.mxu0 0
        %886 = vmatpush1.bf16.xpose.msra.mxu0 0
        %887 = vmatprep.subr.bf16.mxu0 0
        %888 = vmatpush1.bf16.xpose.msra.mxu0 0
        %889 = vmatprep.subr.bf16.mxu0 0
        %890 = vmatpush1.bf16.xpose.msra.mxu0 0
        %891 = vmatprep.subr.bf16.mxu0 0
        %892 = vmatpush1.bf16.xpose.msra.mxu0 0
        %893 = vmatprep.subr.bf16.mxu0 0
        %894 = vmatpush1.bf16.xpose.msra.mxu0 0
        %895 = vmatprep.subr.bf16.mxu0 0
        %896 = vmatpush1.bf16.xpose.msra.mxu0 0
        %897 = vmatprep.subr.bf16.mxu0 0
        %898 = vmatpush1.bf16.xpose.msra.mxu0 %v881
        %899 = vmatprep.subr.bf16.mxu0 0
        %900 = vmatpush2.bf16.xpose.msra.mxu0 0
        %901 = vmatprep.subr.bf16.mxu0 0
        %902 = vmatpush2.bf16.xpose.msra.mxu0 0
        %903 = vmatprep.subr.bf16.mxu0 0
        %904 = vmatpush2.bf16.xpose.msra.mxu0 0
        %905 = vmatprep.subr.bf16.mxu0 0
        %906 = vmatpush2.bf16.xpose.msra.mxu0 0
        %907 = vmatprep.subr.bf16.mxu0 0
        %908 = vmatpush2.bf16.xpose.msra.mxu0 0
        %909 = vmatprep.subr.bf16.mxu0 0
        %910 = vmatpush2.bf16.xpose.msra.mxu0 0
        %911 = vmatprep.subr.bf16.mxu0 0
        %912 = vmatpush2.bf16.xpose.msra.mxu0 0
        %913 = vmatprep.subr.bf16.mxu0 0
        %914 = vmatpush2.bf16.xpose.msra.mxu0 0
        %915 = vmatprep.mubr.bf16.mxu0 0
        %916 = vmatmul.mubr.bf16.gmra.mxu0 %v878
        %v917 = vpop.f32.mrf.mxu0
        %v918 = vadd.f32 %v758, %v917
        %v919 = vpop.f32.mrf.mxu0
        %v920 = vpop.f32.mrf.mxu0
        %v921 = vpop.f32.mrf.mxu0
        %922 = vdwg.mxu0
        %v923 = vsel %vm763, %v918, -inf
        %924 = vmax.xlane.f32.xlu0 %v923
        %v925 = vpop.xlane.xlu0 %924
        %v926 = vsub.f32 %v918, %v925
        %v927 = vmul.f32 %v926, 1.442695
        %v928 = vpow.pop %v927
        %v929 = vsel %vm763, %v928, 0.0
        %930 = vadd.xlane.f32.xlu0 %v929
        %v931 = vpop.xlane.xlu0 %930
        %v932 = vrcp.pop %v931
        %v933 = vmul.f32 %v928, %v932
        %v934 = vpack.c.bf16 %v933, %v933
        %935 = vrot.lane.b32.xlu0 %v753, 56
        %v936 = vpop.permute.xlu0 %935
        %v938 = vsel %vm763, %v934, 0
        %v941 = vsel %vm827, %v936, 0
        %943 = vmatprep.subr.bf16.mxu0 0
        %944 = vmatpush1.bf16.msra.mxu0 0
        %945 = vmatprep.subr.bf16.mxu0 0
        %946 = vmatpush1.bf16.msra.mxu0 0
        %947 = vmatprep.subr.bf16.mxu0 0
        %948 = vmatpush1.bf16.msra.mxu0 0
        %949 = vmatprep.subr.bf16.mxu0 0
        %950 = vmatpush1.bf16.msra.mxu0 0
        %951 = vmatprep.subr.bf16.mxu0 0
        %952 = vmatpush1.bf16.msra.mxu0 0
        %953 = vmatprep.subr.bf16.mxu0 0
        %954 = vmatpush1.bf16.msra.mxu0 0
        %955 = vmatprep.subr.bf16.mxu0 0
        %956 = vmatpush1.bf16.msra.mxu0 0
        %957 = vmatprep.subr.bf16.mxu0 0
        %958 = vmatpush1.bf16.msra.mxu0 %v941
        %959 = vmatprep.subr.bf16.mxu0 0
        %960 = vmatpush2.bf16.msra.mxu0 0
        %961 = vmatprep.subr.bf16.mxu0 0
        %962 = vmatpush2.bf16.msra.mxu0 0
        %963 = vmatprep.subr.bf16.mxu0 0
        %964 = vmatpush2.bf16.msra.mxu0 0
        %965 = vmatprep.subr.bf16.mxu0 0
        %966 = vmatpush2.bf16.msra.mxu0 0
        %967 = vmatprep.subr.bf16.mxu0 0
        %968 = vmatpush2.bf16.msra.mxu0 0
        %969 = vmatprep.subr.bf16.mxu0 0
        %970 = vmatpush2.bf16.msra.mxu0 0
        %971 = vmatprep.subr.bf16.mxu0 0
        %972 = vmatpush2.bf16.msra.mxu0 0
        %973 = vmatprep.subr.bf16.mxu0 0
        %974 = vmatpush2.bf16.msra.mxu0 0
        %975 = vmatprep.mubr.bf16.mxu0 0
        %976 = vmatmul.mubr.bf16.gmra.mxu0 %v938
        %v977 = vpop.f32.mrf.mxu0
        %v978 = vadd.f32 0.0, %v977
        %v979 = vpop.f32.mrf.mxu0
        %v980 = vpop.f32.mrf.mxu0
        %v981 = vpop.f32.mrf.mxu0
        %982 = vdwg.mxu0
        %984 = vrot.lane.b32.xlu0 %v978, 8
        %v985 = vpop.permute.xlu0 %984
        %vm987 = vcmask 130112
        %988 = vst.msk [vmem:[#allocation3] sm:$0xff] %vm987, %v985
        %989 = vrot.lane.b32.xlu0 %v752, 112
        %v990 = vpop.permute.xlu0 %989
        %991 = vrot.lane.b32.xlu0 %v753, 80
        %v992 = vpop.permute.xlu0 %991
        %v994 = vsel %vm763, %v990, 0
        %v997 = vsel %vm763, %v992, 0
        %999 = vmatprep.subr.bf16.mxu0 0
        %1000 = vmatpush1.bf16.xpose.msra.mxu0 0
        %1001 = vmatprep.subr.bf16.mxu0 0
        %1002 = vmatpush1.bf16.xpose.msra.mxu0 0
        %1003 = vmatprep.subr.bf16.mxu0 0
        %1004 = vmatpush1.bf16.xpose.msra.mxu0 0
        %1005 = vmatprep.subr.bf16.mxu0 0
        %1006 = vmatpush1.bf16.xpose.msra.mxu0 0
        %1007 = vmatprep.subr.bf16.mxu0 0
        %1008 = vmatpush1.bf16.xpose.msra.mxu0 0
        %1009 = vmatprep.subr.bf16.mxu0 0
        %1010 = vmatpush1.bf16.xpose.msra.mxu0 0
        %1011 = vmatprep.subr.bf16.mxu0 0
        %1012 = vmatpush1.bf16.xpose.msra.mxu0 0
        %1013 = vmatprep.subr.bf16.mxu0 0
        %1014 = vmatpush1.bf16.xpose.msra.mxu0 %v997
        %1015 = vmatprep.subr.bf16.mxu0 0
        %1016 = vmatpush2.bf16.xpose.msra.mxu0 0
        %1017 = vmatprep.subr.bf16.mxu0 0
        %1018 = vmatpush2.bf16.xpose.msra.mxu0 0
        %1019 = vmatprep.subr.bf16.mxu0 0
        %1020 = vmatpush2.bf16.xpose.msra.mxu0 0
        %1021 = vmatprep.subr.bf16.mxu0 0
        %1022 = vmatpush2.bf16.xpose.msra.mxu0 0
        %1023 = vmatprep.subr.bf16.mxu0 0
        %1024 = vmatpush2.bf16.xpose.msra.mxu0 0
        %1025 = vmatprep.subr.bf16.mxu0 0
        %1026 = vmatpush2.bf16.xpose.msra.mxu0 0
        %1027 = vmatprep.subr.bf16.mxu0 0
        %1028 = vmatpush2.bf16.xpose.msra.mxu0 0
        %1029 = vmatprep.subr.bf16.mxu0 0
        %1030 = vmatpush2.bf16.xpose.msra.mxu0 0
        %1031 = vmatprep.mubr.bf16.mxu0 0
        %1032 = vmatmul.mubr.bf16.gmra.mxu0 %v994
        %v1033 = vpop.f32.mrf.mxu0
        %v1034 = vadd.f32 %v758, %v1033
        %v1035 = vpop.f32.mrf.mxu0
        %v1036 = vpop.f32.mrf.mxu0
        %v1037 = vpop.f32.mrf.mxu0
        %1038 = vdwg.mxu0
        %v1039 = vsel %vm763, %v1034, -inf
        %1040 = vmax.xlane.f32.xlu0 %v1039
        %v1041 = vpop.xlane.xlu0 %1040
        %v1042 = vsub.f32 %v1034, %v1041
        %v1043 = vmul.f32 %v1042, 1.442695
        %v1044 = vpow.pop %v1043
        %v1045 = vsel %vm763, %v1044, 0.0
        %1046 = vadd.xlane.f32.xlu0 %v1045
        %v1047 = vpop.xlane.xlu0 %1046
        %v1048 = vrcp.pop %v1047
        %v1049 = vmul.f32 %v1044, %v1048
        %v1050 = vpack.c.bf16 %v1049, %v1049
        %1051 = vrot.lane.b32.xlu0 %v753, 48
        %v1052 = vpop.permute.xlu0 %1051
        %v1054 = vsel %vm763, %v1050, 0
        %v1057 = vsel %vm827, %v1052, 0
        %1059 = vmatprep.subr.bf16.mxu0 0
        %1060 = vmatpush1.bf16.msra.mxu0 0
        %1061 = vmatprep.subr.bf16.mxu0 0
        %1062 = vmatpush1.bf16.msra.mxu0 0
        %1063 = vmatprep.subr.bf16.mxu0 0
        %1064 = vmatpush1.bf16.msra.mxu0 0
        %1065 = vmatprep.subr.bf16.mxu0 0
        %1066 = vmatpush1.bf16.msra.mxu0 0
        %1067 = vmatprep.subr.bf16.mxu0 0
        %1068 = vmatpush1.bf16.msra.mxu0 0
        %1069 = vmatprep.subr.bf16.mxu0 0
        %1070 = vmatpush1.bf16.msra.mxu0 0
        %1071 = vmatprep.subr.bf16.mxu0 0
        %1072 = vmatpush1.bf16.msra.mxu0 0
        %1073 = vmatprep.subr.bf16.mxu0 0
        %1074 = vmatpush1.bf16.msra.mxu0 %v1057
        %1075 = vmatprep.subr.bf16.mxu0 0
        %1076 = vmatpush2.bf16.msra.mxu0 0
        %1077 = vmatprep.subr.bf16.mxu0 0
        %1078 = vmatpush2.bf16.msra.mxu0 0
        %1079 = vmatprep.subr.bf16.mxu0 0
        %1080 = vmatpush2.bf16.msra.mxu0 0
        %1081 = vmatprep.subr.bf16.mxu0 0
        %1082 = vmatpush2.bf16.msra.mxu0 0
        %1083 = vmatprep.subr.bf16.mxu0 0
        %1084 = vmatpush2.bf16.msra.mxu0 0
        %1085 = vmatprep.subr.bf16.mxu0 0
        %1086 = vmatpush2.bf16.msra.mxu0 0
        %1087 = vmatprep.subr.bf16.mxu0 0
        %1088 = vmatpush2.bf16.msra.mxu0 0
        %1089 = vmatprep.subr.bf16.mxu0 0
        %1090 = vmatpush2.bf16.msra.mxu0 0
        %1091 = vmatprep.mubr.bf16.mxu0 0
        %1092 = vmatmul.mubr.bf16.gmra.mxu0 %v1054
        %v1093 = vpop.f32.mrf.mxu0
        %v1094 = vadd.f32 0.0, %v1093
        %v1095 = vpop.f32.mrf.mxu0
        %v1096 = vpop.f32.mrf.mxu0
        %v1097 = vpop.f32.mrf.mxu0
        %1098 = vdwg.mxu0
        %1100 = vrot.lane.b32.xlu0 %v1094, 16
        %v1101 = vpop.permute.xlu0 %1100
        %vm1103 = vcmask 195712
        %1104 = vst.msk [vmem:[#allocation3] sm:$0xff] %vm1103, %v1101
        %1105 = vrot.lane.b32.xlu0 %v752, 104
        %v1106 = vpop.permute.xlu0 %1105
        %1107 = vrot.lane.b32.xlu0 %v753, 72
        %v1108 = vpop.permute.xlu0 %1107
        %v1110 = vsel %vm763, %v1106, 0
        %v1113 = vsel %vm763, %v1108, 0
        %1115 = vmatprep.subr.bf16.mxu0 0
        %1116 = vmatpush1.bf16.xpose.msra.mxu0 0
        %1117 = vmatprep.subr.bf16.mxu0 0
        %1118 = vmatpush1.bf16.xpose.msra.mxu0 0
        %1119 = vmatprep.subr.bf16.mxu0 0
        %1120 = vmatpush1.bf16.xpose.msra.mxu0 0
        %1121 = vmatprep.subr.bf16.mxu0 0
        %1122 = vmatpush1.bf16.xpose.msra.mxu0 0
        %1123 = vmatprep.subr.bf16.mxu0 0
        %1124 = vmatpush1.bf16.xpose.msra.mxu0 0
        %1125 = vmatprep.subr.bf16.mxu0 0
        %1126 = vmatpush1.bf16.xpose.msra.mxu0 0
        %1127 = vmatprep.subr.bf16.mxu0 0
        %1128 = vmatpush1.bf16.xpose.msra.mxu0 0
        %1129 = vmatprep.subr.bf16.mxu0 0
        %1130 = vmatpush1.bf16.xpose.msra.mxu0 %v1113
        %1131 = vmatprep.subr.bf16.mxu0 0
        %1132 = vmatpush2.bf16.xpose.msra.mxu0 0
        %1133 = vmatprep.subr.bf16.mxu0 0
        %1134 = vmatpush2.bf16.xpose.msra.mxu0 0
        %1135 = vmatprep.subr.bf16.mxu0 0
        %1136 = vmatpush2.bf16.xpose.msra.mxu0 0
        %1137 = vmatprep.subr.bf16.mxu0 0
        %1138 = vmatpush2.bf16.xpose.msra.mxu0 0
        %1139 = vmatprep.subr.bf16.mxu0 0
        %1140 = vmatpush2.bf16.xpose.msra.mxu0 0
        %1141 = vmatprep.subr.bf16.mxu0 0
        %1142 = vmatpush2.bf16.xpose.msra.mxu0 0
        %1143 = vmatprep.subr.bf16.mxu0 0
        %1144 = vmatpush2.bf16.xpose.msra.mxu0 0
        %1145 = vmatprep.subr.bf16.mxu0 0
        %1146 = vmatpush2.bf16.xpose.msra.mxu0 0
        %1147 = vmatprep.mubr.bf16.mxu0 0
        %1148 = vmatmul.mubr.bf16.gmra.mxu0 %v1110
        %v1149 = vpop.f32.mrf.mxu0
        %v1150 = vadd.f32 %v758, %v1149
        %v1151 = vpop.f32.mrf.mxu0
        %v1152 = vpop.f32.mrf.mxu0
        %v1153 = vpop.f32.mrf.mxu0
        %1154 = vdwg.mxu0
        %v1155 = vsel %vm763, %v1150, -inf
        %1156 = vmax.xlane.f32.xlu0 %v1155
        %v1157 = vpop.xlane.xlu0 %1156
        %v1158 = vsub.f32 %v1150, %v1157
        %v1159 = vmul.f32 %v1158, 1.442695
        %v1160 = vpow.pop %v1159
        %v1161 = vsel %vm763, %v1160, 0.0
        %1162 = vadd.xlane.f32.xlu0 %v1161
        %v1163 = vpop.xlane.xlu0 %1162
        %v1164 = vrcp.pop %v1163
        %v1165 = vmul.f32 %v1160, %v1164
        %v1166 = vpack.c.bf16 %v1165, %v1165
        %1167 = vrot.lane.b32.xlu0 %v753, 40
        %v1168 = vpop.permute.xlu0 %1167
        %v1170 = vsel %vm763, %v1166, 0
        %v1173 = vsel %vm827, %v1168, 0
        %1175 = vmatprep.subr.bf16.mxu0 0
        %1176 = vmatpush1.bf16.msra.mxu0 0
        %1177 = vmatprep.subr.bf16.mxu0 0
        %1178 = vmatpush1.bf16.msra.mxu0 0
        %1179 = vmatprep.subr.bf16.mxu0 0
        %1180 = vmatpush1.bf16.msra.mxu0 0
        %1181 = vmatprep.subr.bf16.mxu0 0
        %1182 = vmatpush1.bf16.msra.mxu0 0
        %1183 = vmatprep.subr.bf16.mxu0 0
        %1184 = vmatpush1.bf16.msra.mxu0 0
        %1185 = vmatprep.subr.bf16.mxu0 0
        %1186 = vmatpush1.bf16.msra.mxu0 0
        %1187 = vmatprep.subr.bf16.mxu0 0
        %1188 = vmatpush1.bf16.msra.mxu0 0
        %1189 = vmatprep.subr.bf16.mxu0 0
        %1190 = vmatpush1.bf16.msra.mxu0 %v1173
        %1191 = vmatprep.subr.bf16.mxu0 0
        %1192 = vmatpush2.bf16.msra.mxu0 0
        %1193 = vmatprep.subr.bf16.mxu0 0
        %1194 = vmatpush2.bf16.msra.mxu0 0
        %1195 = vmatprep.subr.bf16.mxu0 0
        %1196 = vmatpush2.bf16.msra.mxu0 0
        %1197 = vmatprep.subr.bf16.mxu0 0
        %1198 = vmatpush2.bf16.msra.mxu0 0
        %1199 = vmatprep.subr.bf16.mxu0 0
        %1200 = vmatpush2.bf16.msra.mxu0 0
        %1201 = vmatprep.subr.bf16.mxu0 0
        %1202 = vmatpush2.bf16.msra.mxu0 0
        %1203 = vmatprep.subr.bf16.mxu0 0
        %1204 = vmatpush2.bf16.msra.mxu0 0
        %1205 = vmatprep.subr.bf16.mxu0 0
        %1206 = vmatpush2.bf16.msra.mxu0 0
        %1207 = vmatprep.mubr.bf16.mxu0 0
        %1208 = vmatmul.mubr.bf16.gmra.mxu0 %v1170
        %v1209 = vpop.f32.mrf.mxu0
        %v1210 = vadd.f32 0.0, %v1209
        %v1211 = vpop.f32.mrf.mxu0
        %v1212 = vpop.f32.mrf.mxu0
        %v1213 = vpop.f32.mrf.mxu0
        %1214 = vdwg.mxu0
        %1216 = vrot.lane.b32.xlu0 %v1210, 24
        %v1217 = vpop.permute.xlu0 %1216
        %vm1219 = vcmask 261312
        %1220 = vst.msk [vmem:[#allocation3] sm:$0xff] %vm1219, %v1217
        %v1221 = vld [vmem:[#allocation3] sm:$0xff]
        %v1222 = vpack.c.bf16 %v1221, %v1221
        %v1223 = vld [vmem:[%s633] sm:$0xf]
        %v1224 = vld [vmem:[%s633 + $0x4] sm:$0xf]
        %v1225 = vld [vmem:[%s633 + $0x8] sm:$0xf]
        %v1226 = vld [vmem:[%s633 + $0xc] sm:$0xf]
        %v1227 = vld [vmem:[%s636] sm:$0x1]
        %v1229 = vlaneseq
        %v1230 = vshrl.u32 %v1229, 7
        %v1231 = vsub.s32 0, %v1230
        %v1232 = vrot.slane %v1227, %v1231
        %v1238 = vunpack.c.l.b16 %v1223
        %v1239 = vunpack.c.l.b16 %v1224
        %v1240 = vunpack.c.l.b16 %v1225
        %v1241 = vunpack.c.l.b16 %v1226
        %v1242 = vpack.c.b16 %v1239, %v1238
        %v1243 = vpack.c.b16 %v1241, %v1240
        %v1247 = vsel %vm706, %v1222, 0
        %1249 = vmatprep.subr.bf16.mxu0 0
        %1250 = vmatpush1.bf16.msra.mxu0 0
        %1251 = vmatprep.subr.bf16.mxu0 0
        %1252 = vmatpush1.bf16.msra.mxu0 0
        %1253 = vmatprep.subr.bf16.mxu0 0
        %1254 = vmatpush1.bf16.msra.mxu0 0
        %1255 = vmatprep.subr.bf16.mxu0 0
        %1256 = vmatpush1.bf16.msra.mxu0 0
        %1257 = vmatprep.subr.bf16.mxu0 0
        %1258 = vmatpush1.bf16.msra.mxu0 0
        %1259 = vmatprep.subr.bf16.mxu0 0
        %1260 = vmatpush1.bf16.msra.mxu0 0
        %1261 = vmatprep.subr.bf16.mxu0 0
        %1262 = vmatpush1.bf16.msra.mxu0 %v1243
        %1263 = vmatprep.subr.bf16.mxu0 0
        %1264 = vmatpush1.bf16.msra.mxu0 %v1242
        %1265 = vmatprep.subr.bf16.mxu0 0
        %1266 = vmatpush2.bf16.msra.mxu0 0
        %1267 = vmatprep.subr.bf16.mxu0 0
        %1268 = vmatpush2.bf16.msra.mxu0 0
        %1269 = vmatprep.subr.bf16.mxu0 0
        %1270 = vmatpush2.bf16.msra.mxu0 0
        %1271 = vmatprep.subr.bf16.mxu0 0
        %1272 = vmatpush2.bf16.msra.mxu0 0
        %1273 = vmatprep.subr.bf16.mxu0 0
        %1274 = vmatpush2.bf16.msra.mxu0 0
        %1275 = vmatprep.subr.bf16.mxu0 0
        %1276 = vmatpush2.bf16.msra.mxu0 0
        %1277 = vmatprep.subr.bf16.mxu0 0
        %1278 = vmatpush2.bf16.msra.mxu0 0
        %1279 = vmatprep.subr.bf16.mxu0 0
        %1280 = vmatpush2.bf16.msra.mxu0 0
        %1281 = vmatprep.mubr.bf16.mxu0 0
        %1282 = vmatmul.mubr.bf16.gmra.mxu0 %v1247
        %v1283 = vpop.f32.mrf.mxu0
        %v1284 = vadd.f32 %v1232, %v1283
        %v1285 = vpop.f32.mrf.mxu0
        %v1286 = vpop.f32.mrf.mxu0
        %v1287 = vpop.f32.mrf.mxu0
        %1288 = vdwg.mxu0
        %v1289 = vadd.f32 %v681, %v1284
        %v1290 = vsel %vm706, %v1289, 0.0
        %1291 = vadd.xlane.f32.xlu0 %v1290
        %v1292 = vpop.xlane.xlu0 %1291
        %v1293 = vrcp.pop 32.0
        %v1294 = vmul.f32 %v1292, %v1293
        %v1295 = vsub.f32 %v1289, %v1294
        %v1296 = vmul.f32 %v1295, %v1295
        %v1297 = vsel %vm706, %v1296, 0.0
        %1298 = vadd.xlane.f32.xlu0 %v1297
        %v1299 = vpop.xlane.xlu0 %1298
        %v1300 = vmul.f32 %v1299, %v1293
        %v1301 = vadd.f32 %v1300, 1e-05
        %v1302 = vrsqrt.pop %v1301
        %v1303 = vmul.f32 %v1295, %v1302
        %v1304 = vld [vmem:[%s639] sm:$0x1]
        %v1306 = vlaneseq
        %v1307 = vshrl.u32 %v1306, 7
        %v1308 = vsub.s32 0, %v1307
        %v1309 = vrot.slane %v1304, %v1308
        %v1311 = vmul.f32 %v1303, %v1309
        %v1312 = vld [vmem:[%s642] sm:$0x1]
        %v1314 = vlaneseq
        %v1315 = vshrl.u32 %v1314, 7
        %v1316 = vsub.s32 0, %v1315
        %v1317 = vrot.slane %v1312, %v1316
        %v1319 = vadd.f32 %v1311, %v1317
        %v1320 = vpack.c.bf16 %v1319, %v1319
        %v1321 = vld [vmem:[%s647] sm:$0xf]
        %v1322 = vld [vmem:[%s647 + $0x4] sm:$0xf]
        %v1323 = vld [vmem:[%s647 + $0x8] sm:$0xf]
        %v1324 = vld [vmem:[%s647 + $0xc] sm:$0xf]
        %v1325 = vld [vmem:[%s650] sm:$0x1]
        %v1327 = vlaneseq
        %v1328 = vshrl.u32 %v1327, 7
        %v1329 = vsub.s32 0, %v1328
        %v1330 = vrot.slane %v1325, %v1329
        %v1336 = vunpack.c.l.b16 %v1321
        %v1337 = vunpack.c.l.b16 %v1322
        %v1338 = vunpack.c.l.b16 %v1323
        %v1339 = vunpack.c.l.b16 %v1324
        %v1340 = vpack.c.b16 %v1337, %v1336
        %v1341 = vpack.c.b16 %v1339, %v1338
        %v1345 = vsel %vm706, %v1320, 0
        %1347 = vmatprep.subr.bf16.mxu0 0
        %1348 = vmatpush1.bf16.msra.mxu0 0
        %1349 = vmatprep.subr.bf16.mxu0 0
        %1350 = vmatpush1.bf16.msra.mxu0 0
        %1351 = vmatprep.subr.bf16.mxu0 0
        %1352 = vmatpush1.bf16.msra.mxu0 0
        %1353 = vmatprep.subr.bf16.mxu0 0
        %1354 = vmatpush1.bf16.msra.mxu0 0
        %1355 = vmatprep.subr.bf16.mxu0 0
        %1356 = vmatpush1.bf16.msra.mxu0 0
        %1357 = vmatprep.subr.bf16.mxu0 0
        %1358 = vmatpush1.bf16.msra.mxu0 0
        %1359 = vmatprep.subr.bf16.mxu0 0
        %1360 = vmatpush1.bf16.msra.mxu0 %v1341
        %1361 = vmatprep.subr.bf16.mxu0 0
        %1362 = vmatpush1.bf16.msra.mxu0 %v1340
        %1363 = vmatprep.subr.bf16.mxu0 0
        %1364 = vmatpush2.bf16.msra.mxu0 0
        %1365 = vmatprep.subr.bf16.mxu0 0
        %1366 = vmatpush2.bf16.msra.mxu0 0
        %1367 = vmatprep.subr.bf16.mxu0 0
        %1368 = vmatpush2.bf16.msra.mxu0 0
        %1369 = vmatprep.subr.bf16.mxu0 0
        %1370 = vmatpush2.bf16.msra.mxu0 0
        %1371 = vmatprep.subr.bf16.mxu0 0
        %1372 = vmatpush2.bf16.msra.mxu0 0
        %1373 = vmatprep.subr.bf16.mxu0 0
        %1374 = vmatpush2.bf16.msra.mxu0 0
        %1375 = vmatprep.subr.bf16.mxu0 0
        %1376 = vmatpush2.bf16.msra.mxu0 0
        %1377 = vmatprep.subr.bf16.mxu0 0
        %1378 = vmatpush2.bf16.msra.mxu0 0
        %1379 = vmatprep.mubr.bf16.mxu0 0
        %1380 = vmatmul.mubr.bf16.gmra.mxu0 %v1345
        %v1381 = vpop.f32.mrf.mxu0
        %v1382 = vadd.f32 %v1330, %v1381
        %v1383 = vpop.f32.mrf.mxu0
        %v1384 = vpop.f32.mrf.mxu0
        %v1385 = vpop.f32.mrf.mxu0
        %1386 = vdwg.mxu0
        %v1387 = vmax.f32 %v1382, 0.0
        %v1388 = vpack.c.bf16 %v1387, %v1387
        %v1389 = vld [vmem:[%s655] sm:$0xf]
        %v1390 = vld [vmem:[%s655 + $0x4] sm:$0xf]
        %v1391 = vld [vmem:[%s655 + $0x8] sm:$0xf]
        %v1392 = vld [vmem:[%s655 + $0xc] sm:$0xf]
        %v1393 = vld [vmem:[%s655 + $0x10] sm:$0xf]
        %v1394 = vld [vmem:[%s655 + $0x14] sm:$0xf]
        %v1395 = vld [vmem:[%s655 + $0x18] sm:$0xf]
        %v1396 = vld [vmem:[%s655 + $0x1c] sm:$0xf]
        %v1397 = vld [vmem:[%s658] sm:$0x1]
        %v1399 = vlaneseq
        %v1400 = vshrl.u32 %v1399, 7
        %v1401 = vsub.s32 0, %v1400
        %v1402 = vrot.slane %v1397, %v1401
        %v1412 = vunpack.c.l.b16 %v1389
        %v1413 = vunpack.c.l.b16 %v1390
        %v1414 = vunpack.c.l.b16 %v1391
        %v1415 = vunpack.c.l.b16 %v1392
        %v1416 = vunpack.c.l.b16 %v1393
        %v1417 = vunpack.c.l.b16 %v1394
        %v1418 = vunpack.c.l.b16 %v1395
        %v1419 = vunpack.c.l.b16 %v1396
        %v1420 = vpack.c.b16 %v1413, %v1412
        %v1421 = vpack.c.b16 %v1415, %v1414
        %v1422 = vpack.c.b16 %v1417, %v1416
        %v1423 = vpack.c.b16 %v1419, %v1418
        %vm1428 = vcmask 523264
        %v1430 = vsel %vm1428, %v1388, 0
        %1432 = vmatprep.subr.bf16.mxu0 0
        %1433 = vmatpush1.bf16.msra.mxu0 0
        %1434 = vmatprep.subr.bf16.mxu0 0
        %1435 = vmatpush1.bf16.msra.mxu0 0
        %1436 = vmatprep.subr.bf16.mxu0 0
        %1437 = vmatpush1.bf16.msra.mxu0 0
        %1438 = vmatprep.subr.bf16.mxu0 0
        %1439 = vmatpush1.bf16.msra.mxu0 0
        %1440 = vmatprep.subr.bf16.mxu0 0
        %1441 = vmatpush1.bf16.msra.mxu0 %v1423
        %1442 = vmatprep.subr.bf16.mxu0 0
        %1443 = vmatpush1.bf16.msra.mxu0 %v1422
        %1444 = vmatprep.subr.bf16.mxu0 0
        %1445 = vmatpush1.bf16.msra.mxu0 %v1421
        %1446 = vmatprep.subr.bf16.mxu0 0
        %1447 = vmatpush1.bf16.msra.mxu0 %v1420
        %1448 = vmatprep.subr.bf16.mxu0 0
        %1449 = vmatpush2.bf16.msra.mxu0 0
        %1450 = vmatprep.subr.bf16.mxu0 0
        %1451 = vmatpush2.bf16.msra.mxu0 0
        %1452 = vmatprep.subr.bf16.mxu0 0
        %1453 = vmatpush2.bf16.msra.mxu0 0
        %1454 = vmatprep.subr.bf16.mxu0 0
        %1455 = vmatpush2.bf16.msra.mxu0 0
        %1456 = vmatprep.subr.bf16.mxu0 0
        %1457 = vmatpush2.bf16.msra.mxu0 0
        %1458 = vmatprep.subr.bf16.mxu0 0
        %1459 = vmatpush2.bf16.msra.mxu0 0
        %1460 = vmatprep.subr.bf16.mxu0 0
        %1461 = vmatpush2.bf16.msra.mxu0 0
        %1462 = vmatprep.subr.bf16.mxu0 0
        %1463 = vmatpush2.bf16.msra.mxu0 0
        %1464 = vmatprep.mubr.bf16.mxu0 0
        %1465 = vmatmul.mubr.bf16.gmra.mxu0 %v1430
        %v1466 = vpop.f32.mrf.mxu0
        %v1467 = vadd.f32 %v1402, %v1466
        %v1468 = vpop.f32.mrf.mxu0
        %v1469 = vpop.f32.mrf.mxu0
        %v1470 = vpop.f32.mrf.mxu0
        %1471 = vdwg.mxu0
        %v1472 = vadd.f32 %v1319, %v1467
        %v1473 = vsel %vm706, %v1472, 0.0
        %1474 = vadd.xlane.f32.xlu0 %v1473
        %v1475 = vpop.xlane.xlu0 %1474
        %v1476 = vmul.f32 %v1475, %v1293
        %v1477 = vsub.f32 %v1472, %v1476
        %v1478 = vmul.f32 %v1477, %v1477
        %v1479 = vsel %vm706, %v1478, 0.0
        %1480 = vadd.xlane.f32.xlu0 %v1479
        %v1481 = vpop.xlane.xlu0 %1480
        %v1482 = vmul.f32 %v1481, %v1293
        %v1483 = vadd.f32 %v1482, 1e-05
        %v1484 = vrsqrt.pop %v1483
        %v1485 = vmul.f32 %v1477, %v1484
        %v1486 = vld [vmem:[%s661] sm:$0x1]
        %v1488 = vlaneseq
        %v1489 = vshrl.u32 %v1488, 7
        %v1490 = vsub.s32 0, %v1489
        %v1491 = vrot.slane %v1486, %v1490
        %v1493 = vmul.f32 %v1485, %v1491
        %v1494 = vld [vmem:[%s664] sm:$0x1]
        %v1496 = vlaneseq
        %v1497 = vshrl.u32 %v1496, 7
        %v1498 = vsub.s32 0, %v1497
        %v1499 = vrot.slane %v1494, %v1498
        %v1501 = vadd.f32 %v1493, %v1499
        %1502 = vst.msk [vmem:[#allocation2] sm:$0xff] %vm706, %v1501
        %p1503 = scmp.eq.s32.totalorder %s40, 1
        // Predicated region
        $region81: #{tpu_custom_call.1} parent=71 // pred_check
          %p1504 = pneg %p1503
        $region82: #{tpu_custom_call.1} parent=71 // pred_check_branch
          %1506 = sbr.rel (%p1504) target = $region84
        $region83: #{tpu_custom_call.1} parent=71 // pred_region
          %1507 = vst.msk [vmem:[%s620] sm:$0xff] %vm706, %v1501
        $region84: #{tpu_custom_call.1} parent=71 // pred_fallthru
          _
        %s1508 = sand.u32 %s393, 1
        %s1509 = scalar_lea.sflag [#allocation9], %s1508
        %s1510 = sand.u32 %s393, 1
        %s1511 = smul.addr %s1510, 8
        %s1512 = scalar_lea.vmem [#allocation10], %s1511
        // Predicated region
        $region85: #{tpu_custom_call.1} parent=71 // pred_check
          %p1513 = pneg %p403
        $region86: #{tpu_custom_call.1} parent=71 // pred_check_branch
          %1515 = sbr.rel (%p1513) target = $region88
        $region87: #{tpu_custom_call.1} parent=71 // pred_region
          %s1517 = ssub.s32 128, 128
          %1518 = vsyncadd %s1509, %s1517
          %s1519 = smul.addr %s39, 128
          %s1520 = scalar_lea.hbm %s14, %s1519
          %s1522 = sshll.u32 %s1512, 4
          %s1523 = int_to_ptr.vmem [resolvable:$true] %s1522
          %1525 = dma.vmem_to_hbm [thread:$0]  %s1523, 128, %s1520, %s1509
        $region88: #{tpu_custom_call.1} parent=71 // pred_fallthru
          _
      $region72: #{tpu_custom_call.1} parent=5 // pred_fallthru
        _
      %p1526 = scmp.le.s32.totalorder 2, %s30
      // Predicated region
      $region89: #{tpu_custom_call.1} parent=5 // pred_check
        %p1527 = pneg %p1526
      $region90: #{tpu_custom_call.1} parent=5 // pred_check_branch
        %1529 = sbr.rel (%p1527) target = $region92
      $region91: #{tpu_custom_call.1} parent=5 // pred_region
        %s1530 = ssub.s32 %s30, 2
        // Predicated region
        $region93: #{tpu_custom_call.1} parent=91 // pred_check
          %p1531 = pneg %p409
        $region94: #{tpu_custom_call.1} parent=91 // pred_check_branch
          %1533 = sbr.rel (%p1531) target = $region96
        $region95: #{tpu_custom_call.1} parent=91 // pred_region
          %s1534 = sand.u32 %s394, 1
          %s1535 = scalar_lea.sflag [#allocation9], %s1534
          %s1536 = sand.u32 %s394, 1
          %s1537 = smul.addr %s1536, 8
          %s1538 = scalar_lea.vmem [#allocation10], %s1537
          %1539 = dma.done %s1535, 128
        $region96: #{tpu_custom_call.1} parent=91 // pred_fallthru
          _
      $region92: #{tpu_custom_call.1} parent=5 // pred_fallthru
        _
    $region6: #{tpu_custom_call.1} parent=1 // loop_footer
      %s34 = sadd.s32 1, %s30
    $region7: #{tpu_custom_call.1} parent=1 // loop_footer_branch
      %29 = sbr.rel target = $region3
    $region8: #{tpu_custom_call.1} parent=1 // loop_exit
      _
    %1540 = vsyncpa [#allocation8], 1
    %s1541 = scalar_lea.sflag [#allocation8], 1
    %1542 = vsyncpa %s1541, 1
    %1543 = vsyncpa [#allocation9], 1
    %s1544 = scalar_lea.sflag [#allocation9], 1
    %1545 = vsyncpa %s1544, 1

</llo_original>
